<compile_context>
chip_gen: v7x
topology: tpu7x:2x2x1
jax: 0.10.0
libtpu: 0.0.40
codegen_flags: <defaults>
</compile_context>

<pallas_src>
import jax
import jax.numpy as jnp
from jax.experimental import pallas as pl
from jax.experimental.pallas import tpu as pltpu


def _round_up(n, m):
    return ((n + m - 1) // m) * m


def _cdiv(a, b):
    return -(-a // b)


def _mlp1_kernel(x_ref, w1_ref, b1_ref, w2_ref, b2_ref, w3_ref, b3_ref,
                 xt_ref, xout_ref):
    # dropout p=0 == identity; GELU intentionally not applied (matches forward()).
    xv = x_ref[...].astype(w1_ref.dtype)                      # in-kernel cast
    h1 = jnp.dot(xv, w1_ref[...],
                 preferred_element_type=jnp.float32) + b1_ref[...]
    x_out = jnp.dot(h1.astype(w2_ref.dtype), w2_ref[...],
                    preferred_element_type=jnp.float32) + b2_ref[...]
    xt = jnp.dot(x_out.astype(w3_ref.dtype), w3_ref[...],
                 preferred_element_type=jnp.float32) + b3_ref[...]
    xout_ref[...] = x_out.astype(xout_ref.dtype)               # (tb, 200) lane-dense
    xt_ref[...] = xt.astype(xt_ref.dtype)                      # (tb, n_target) masked vst


def prepare_params(params, compute_dtype=jnp.float32):
    """One-time parameter preparation (call at init, NOT per forward).

    params: PyTorch-convention dict (weight: (out, in), bias: (out,)).
    Weights are transposed once to (in, out) layout; biases kept f32 (1, dim)
    for the VPU epilogue; optional bf16 MXU operands via compute_dtype.
    """
    w1 = jnp.asarray(params["fc1_w"], jnp.float32).T           # (in, hid)
    w2 = jnp.asarray(params["fc2_w"], jnp.float32).T           # (hid, 200)
    w3 = jnp.asarray(params["fc3_w"], jnp.float32).T           # (200, nt)
    return {
        "w1": w1.astype(compute_dtype),
        "w2": w2.astype(compute_dtype),
        "w3": w3.astype(compute_dtype),
        "b1": jnp.asarray(params["fc1_b"], jnp.float32)[None, :],
        "b2": jnp.asarray(params["fc2_b"], jnp.float32)[None, :],
        "b3": jnp.asarray(params["fc3_b"], jnp.float32)[None, :],
        "compute_dtype": compute_dtype,
    }


def _vmem_cap_bytes():
    # Generation-aware cap: ~80% of physical VMEM (≈51 MiB on v7x's 64 MiB,
    # ≈102 MiB on v5e/v6e's 128 MiB), leaving headroom for Mosaic scratch.
    try:
        phys = int(pltpu.get_tpu_info().vmem_capacity_bytes)
    except Exception:
        phys = 64 << 20            # conservative fallback (safe on all gens)
    return int(phys * 0.8)


def mlp1_forward(x, prep, *, block_b=4096, force_pallas=False):
    """x: (B, in_features). Returns (x, x_out) exactly as the PyTorch forward."""
    B, in_f = x.shape
    w1, w2, w3 = prep["w1"], prep["w2"], prep["w3"]
    b1, b2, b3 = prep["b1"], prep["b2"], prep["b3"]
    hid = w1.shape[1]
    xout_dim = w2.shape[1]                                     # 200
    n_target = w3.shape[1]
    cd = prep["compute_dtype"]
    out_dtype = x.dtype

    # Small-problem bypass: fixed pallas_call / pipeline overhead dominates,
    # XLA fusion wins at tiny shapes.
    if not force_pallas and B * in_f < (1 << 17):
        h1 = jnp.dot(x.astype(cd), w1, preferred_element_type=jnp.float32) + b1
        x_out = jnp.dot(h1.astype(cd), w2, preferred_element_type=jnp.float32) + b2
        xt = jnp.dot(x_out.astype(cd), w3, preferred_element_type=jnp.float32) + b3
        return xt.astype(out_dtype), x_out.astype(out_dtype)

    # ---- batch tile selection (multiple of 8 sublanes) ----
    tb = min(block_b, _round_up(B, 8))
    # v7x megacore: prefer >= 2 grid steps so both TensorCores get a tile
    # (near-free on v5e/v6e: one extra ~0.35 us pipeline step).
    if _cdiv(B, tb) < 2 and B >= 64:
        tb = max(8, _round_up(_cdiv(B, 2), 8))

    cd_sz = jnp.dtype(cd).itemsize
    x_sz = jnp.dtype(x.dtype).itemsize
    o_sz = jnp.dtype(out_dtype).itemsize
    nt_pad = _round_up(n_target, 128)          # lane padding of the narrow output

    # VMEM accounting per batch row: double-buffered IO tiles + in-kernel temps.
    io_per_row = 2 * in_f * x_sz + 2 * xout_dim * o_sz + 2 * nt_pad * o_sz
    tmp_per_row = (in_f * cd_sz                # cast of x tile
                   + hid * (4 + cd_sz)         # h1 f32 + cast
                   + xout_dim * (4 + cd_sz)    # x_out f32 + cast
                   + nt_pad * 4)               # xt f32 (lane padded)
    per_row = io_per_row + tmp_per_row
    weight_bytes = 2 * ((in_f * hid + hid * xout_dim + xout_dim * nt_pad) * cd_sz
                        + (hid + xout_dim + nt_pad) * 4)

    cap = _vmem_cap_bytes()
    max_tb = max(8, ((cap - weight_bytes) // max(per_row, 1)) // 8 * 8)
    tb = max(8, min(tb, max_tb))
    vmem_limit = int(min(cap, max(16 << 20, weight_bytes + tb * per_row + (4 << 20))))

    grid = (_cdiv(B, tb),)     # partial last block handled by Pallas masking

    xt, x_out = pl.pallas_call(
        _mlp1_kernel,
        out_shape=(jax.ShapeDtypeStruct((B, n_target), out_dtype),
                   jax.ShapeDtypeStruct((B, xout_dim), out_dtype)),
        grid_spec=pltpu.PrefetchScalarGridSpec(
            num_scalar_prefetch=0,
            grid=grid,
            in_specs=[
                pl.BlockSpec((tb, in_f), lambda i: (i, 0)),        # x tile
                pl.BlockSpec((in_f, hid), lambda i: (0, 0)),       # W1 (resident)
                pl.BlockSpec((1, hid), lambda i: (0, 0)),          # b1
                pl.BlockSpec((hid, xout_dim), lambda i: (0, 0)),   # W2 (resident)
                pl.BlockSpec((1, xout_dim), lambda i: (0, 0)),     # b2
                pl.BlockSpec((xout_dim, n_target), lambda i: (0, 0)),  # W3 (resident)
                pl.BlockSpec((1, n_target), lambda i: (0, 0)),     # b3
            ],
            out_specs=[
                pl.BlockSpec((tb, n_target), lambda i: (i, 0)),    # x
                pl.BlockSpec((tb, xout_dim), lambda i: (i, 0)),    # x_out
            ],
        ),
        compiler_params=pltpu.CompilerParams(
            dimension_semantics=("parallel",),
            vmem_limit_bytes=vmem_limit,
        ),
    )(x, w1, b1, w2, b2, w3, b3)

    return xt, x_out


def init_params(key, in_features, n_target=2):
    """Deterministic synthetic parameters, PyTorch nn.Linear shapes."""
    hid = in_features // 2
    keys = jax.random.split(key, 6)

    def lin(kw, kb, fan_out, fan_in):
        bound = 1.0 / (fan_in ** 0.5)
        w = jax.random.uniform(kw, (fan_out, fan_in), jnp.float32, -bound, bound)
        b = jax.random.uniform(kb, (fan_out,), jnp.float32, -bound, bound)
        return w, b

    fc1_w, fc1_b = lin(keys[0], keys[1], hid, in_features)
    fc2_w, fc2_b = lin(keys[2], keys[3], 200, hid)
    fc3_w, fc3_b = lin(keys[4], keys[5], n_target, 200)
    return dict(fc1_w=fc1_w, fc1_b=fc1_b,
                fc2_w=fc2_w, fc2_b=fc2_b,
                fc3_w=fc3_w, fc3_b=fc3_b)


if __name__ == "__main__":
    key = jax.random.PRNGKey(0)
    k_x, k_p = jax.random.split(key)

    B = 300              # exercises a masked partial last block with block_b=128
    in_features = 32
    n_target = 2

    x = jax.random.normal(k_x, (B, in_features), jnp.float32)
    params = init_params(k_p, in_features, n_target)

    # Pure-JAX reference (same semantics as the PyTorch forward).
    ref1 = x @ params["fc1_w"].T + params["fc1_b"]
    ref_xout = ref1 @ params["fc2_w"].T + params["fc2_b"]
    ref_x = ref_xout @ params["fc3_w"].T + params["fc3_b"]

    # f32 Pallas path (forced; small tile so grid=3 with a masked partial block).
    prep_f32 = prepare_params(params, jnp.float32)
    out_x, out_xout = mlp1_forward(x, prep_f32, block_b=128, force_pallas=True)
    jax.block_until_ready((out_x, out_xout))
    assert out_x.shape == (B, n_target) and out_xout.shape == (B, 200)
    assert jnp.allclose(out_x, ref_x, atol=1e-4, rtol=1e-4)
    assert jnp.allclose(out_xout, ref_xout, atol=1e-4, rtol=1e-4)

    # bf16-operand Pallas path (v6e/v7x MXU-friendly): loose tolerance.
    prep_bf16 = prepare_params(params, jnp.bfloat16)
    out_x_b, out_xout_b = mlp1_forward(x, prep_bf16, block_b=128, force_pallas=True)
    jax.block_until_ready((out_x_b, out_xout_b))
    assert jnp.allclose(out_x_b, ref_x, atol=1e-1, rtol=1e-1)
    assert jnp.allclose(out_xout_b, ref_xout, atol=1e-1, rtol=1e-1)

    # Automatic small-problem bypass (XLA path) — same semantics.
    out_x_a, out_xout_a = mlp1_forward(x, prep_f32)
    jax.block_until_ready((out_x_a, out_xout_a))
    assert jnp.allclose(out_x_a, ref_x, atol=1e-4, rtol=1e-4)
    assert jnp.allclose(out_xout_a, ref_xout, atol=1e-4, rtol=1e-4)

    print("KERNEL_OK")
</pallas_src>

<mosaic_0001>
module attributes {stable_mosaic.version = 11 : i64} {
  func.func @_mlp1_kernel(%arg0: i32, %arg1: memref<128x32xf32, #tpu.memory_space<vmem>>, %arg2: memref<32x16xf32, #tpu.memory_space<vmem>>, %arg3: memref<1x16xf32, #tpu.memory_space<vmem>>, %arg4: memref<16x200xf32, #tpu.memory_space<vmem>>, %arg5: memref<1x200xf32, #tpu.memory_space<vmem>>, %arg6: memref<200x2xf32, #tpu.memory_space<vmem>>, %arg7: memref<1x2xf32, #tpu.memory_space<vmem>>, %arg8: memref<128x2xf32, #tpu.memory_space<vmem>>, %arg9: memref<128x200xf32, #tpu.memory_space<vmem>>) attributes {dimension_semantics = [#tpu.dimension_semantics<parallel>], iteration_bounds = array<i64: 3>, scalar_prefetch = 0 : i64, scratch_operands = 0 : i64, tpu.core_type = #tpu.core_type<tc>, window_params = [{transform_indices = @transform_0, window_bounds = array<i64: 128, 32>}, {pipeline_mode = #tpu.pipeline_mode<synchronous>, transform_indices = @transform_1, window_bounds = array<i64: 32, 16>}, {pipeline_mode = #tpu.pipeline_mode<synchronous>, transform_indices = @transform_2, window_bounds = array<i64: 1, 16>}, {pipeline_mode = #tpu.pipeline_mode<synchronous>, transform_indices = @transform_3, window_bounds = array<i64: 16, 200>}, {pipeline_mode = #tpu.pipeline_mode<synchronous>, transform_indices = @transform_4, window_bounds = array<i64: 1, 200>}, {pipeline_mode = #tpu.pipeline_mode<synchronous>, transform_indices = @transform_5, window_bounds = array<i64: 200, 2>}, {pipeline_mode = #tpu.pipeline_mode<synchronous>, transform_indices = @transform_6, window_bounds = array<i64: 1, 2>}, {transform_indices = @transform_7, window_bounds = array<i64: 128, 2>}, {transform_indices = @transform_8, window_bounds = array<i64: 128, 200>}]} {
    %c0 = arith.constant 0 : index
    %c0_0 = arith.constant 0 : index
    %0 = vector.load %arg1[%c0, %c0_0] : memref<128x32xf32, #tpu.memory_space<vmem>>, vector<128x32xf32>
    %c0_1 = arith.constant 0 : index
    %c0_2 = arith.constant 0 : index
    %1 = vector.load %arg2[%c0_1, %c0_2] : memref<32x16xf32, #tpu.memory_space<vmem>>, vector<32x16xf32>
    %cst = arith.constant dense<0.000000e+00> : vector<128x16xf32>
    %2 = tpu.matmul %0, %1, %cst {dimension_numbers = #tpu.dot_dimension_numbers<[1], [0], [0], [1], [0, 0, 1, 1], [], []>} : vector<128x32xf32>, vector<32x16xf32>, vector<128x16xf32> -> vector<128x16xf32>
    %c0_3 = arith.constant 0 : index
    %c0_4 = arith.constant 0 : index
    %3 = vector.load %arg3[%c0_3, %c0_4] : memref<1x16xf32, #tpu.memory_space<vmem>>, vector<1x16xf32>
    %4 = vector.broadcast %3 : vector<1x16xf32> to vector<128x16xf32>
    %5 = arith.addf %2, %4 : vector<128x16xf32>
    %c0_5 = arith.constant 0 : index
    %c0_6 = arith.constant 0 : index
    %6 = vector.load %arg4[%c0_5, %c0_6] : memref<16x200xf32, #tpu.memory_space<vmem>>, vector<16x200xf32>
    %cst_7 = arith.constant dense<0.000000e+00> : vector<128x200xf32>
    %7 = tpu.matmul %5, %6, %cst_7 {dimension_numbers = #tpu.dot_dimension_numbers<[1], [0], [0], [1], [0, 0, 1, 1], [], []>} : vector<128x16xf32>, vector<16x200xf32>, vector<128x200xf32> -> vector<128x200xf32>
    %c0_8 = arith.constant 0 : index
    %c0_9 = arith.constant 0 : index
    %8 = vector.load %arg5[%c0_8, %c0_9] : memref<1x200xf32, #tpu.memory_space<vmem>>, vector<1x200xf32>
    %9 = vector.broadcast %8 : vector<1x200xf32> to vector<128x200xf32>
    %10 = arith.addf %7, %9 : vector<128x200xf32>
    %c0_10 = arith.constant 0 : index
    %c0_11 = arith.constant 0 : index
    %11 = vector.load %arg6[%c0_10, %c0_11] : memref<200x2xf32, #tpu.memory_space<vmem>>, vector<200x2xf32>
    %cst_12 = arith.constant dense<0.000000e+00> : vector<128x2xf32>
    %12 = tpu.matmul %10, %11, %cst_12 {dimension_numbers = #tpu.dot_dimension_numbers<[1], [0], [0], [1], [0, 0, 1, 1], [], []>} : vector<128x200xf32>, vector<200x2xf32>, vector<128x2xf32> -> vector<128x2xf32>
    %c0_13 = arith.constant 0 : index
    %c0_14 = arith.constant 0 : index
    %13 = vector.load %arg7[%c0_13, %c0_14] : memref<1x2xf32, #tpu.memory_space<vmem>>, vector<1x2xf32>
    %14 = vector.broadcast %13 : vector<1x2xf32> to vector<128x2xf32>
    %15 = arith.addf %12, %14 : vector<128x2xf32>
    %c0_15 = arith.constant 0 : index
    %c0_16 = arith.constant 0 : index
    %16 = vector.load %arg9[%c0_15, %c0_16] : memref<128x200xf32, #tpu.memory_space<vmem>>, vector<128x200xf32>
    tpu.vector_store %arg9[%c0_15, %c0_16], %10 {strides = array<i32>} : memref<128x200xf32, #tpu.memory_space<vmem>>, vector<128x200xf32>,
    %c0_17 = arith.constant 0 : index
    %c0_18 = arith.constant 0 : index
    %17 = vector.load %arg8[%c0_17, %c0_18] : memref<128x2xf32, #tpu.memory_space<vmem>>, vector<128x2xf32>
    tpu.vector_store %arg8[%c0_17, %c0_18], %15 {strides = array<i32>} : memref<128x2xf32, #tpu.memory_space<vmem>>, vector<128x2xf32>,
    return
  }
  func.func @transform_0(%arg0: i32) -> (i32, i32) {
    %c0_i32 = arith.constant 0 : i32
    %c0_i32_0 = arith.constant 0 : i32
    return %arg0, %c0_i32 : i32, i32
  }
  func.func @transform_1(%arg0: i32) -> (i32, i32) {
    %c0_i32 = arith.constant 0 : i32
    %c0_i32_0 = arith.constant 0 : i32
    %c0_i32_1 = arith.constant 0 : i32
    return %c0_i32, %c0_i32_0 : i32, i32
  }
  func.func @transform_2(%arg0: i32) -> (i32, i32) {
    %c0_i32 = arith.constant 0 : i32
    %c0_i32_0 = arith.constant 0 : i32
    %c0_i32_1 = arith.constant 0 : i32
    return %c0_i32, %c0_i32_0 : i32, i32
  }
  func.func @transform_3(%arg0: i32) -> (i32, i32) {
    %c0_i32 = arith.constant 0 : i32
    %c0_i32_0 = arith.constant 0 : i32
    %c0_i32_1 = arith.constant 0 : i32
    return %c0_i32, %c0_i32_0 : i32, i32
  }
  func.func @transform_4(%arg0: i32) -> (i32, i32) {
    %c0_i32 = arith.constant 0 : i32
    %c0_i32_0 = arith.constant 0 : i32
    %c0_i32_1 = arith.constant 0 : i32
    return %c0_i32, %c0_i32_0 : i32, i32
  }
  func.func @transform_5(%arg0: i32) -> (i32, i32) {
    %c0_i32 = arith.constant 0 : i32
    %c0_i32_0 = arith.constant 0 : i32
    %c0_i32_1 = arith.constant 0 : i32
    return %c0_i32, %c0_i32_0 : i32, i32
  }
  func.func @transform_6(%arg0: i32) -> (i32, i32) {
    %c0_i32 = arith.constant 0 : i32
    %c0_i32_0 = arith.constant 0 : i32
    %c0_i32_1 = arith.constant 0 : i32
    return %c0_i32, %c0_i32_0 : i32, i32
  }
  func.func @transform_7(%arg0: i32) -> (i32, i32) {
    %c0_i32 = arith.constant 0 : i32
    %c0_i32_0 = arith.constant 0 : i32
    return %arg0, %c0_i32 : i32, i32
  }
  func.func @transform_8(%arg0: i32) -> (i32, i32) {
    %c0_i32 = arith.constant 0 : i32
    %c0_i32_0 = arith.constant 0 : i32
    return %arg0, %c0_i32 : i32, i32
  }
}

</mosaic_0001>

<llo_original>
// kernel: tpu_custom_call.1
$region0: #{tpu_custom_call.1}
  #allocation0 [shape = 'u32[]', space=smem, size = 0x4, offset = 0x4, fixed_abs, tag = 'smem constant byte address 0x4 - core index']
  #allocation1 [shape = 'u32[144,128]{1,0:T(1,128)}', space=vmem, size = 0x12000, scoped, tag = 'internal scratch']
  %s0 = inlined_call_operand.vmem [shape: f32[300,32], index: 0, kind: input, shape index: {}]
  %s1 = inlined_call_operand.vmem [shape: f32[32,16], index: 1, kind: input, shape index: {}]
  %s2 = inlined_call_operand.vmem [shape: f32[1,16], index: 2, kind: input, shape index: {}]
  %s3 = inlined_call_operand.vmem [shape: f32[16,200], index: 3, kind: input, shape index: {}]
  %s4 = inlined_call_operand.vmem [shape: f32[1,200], index: 4, kind: input, shape index: {}]
  %s5 = inlined_call_operand.vmem [shape: f32[200,2], index: 5, kind: input, shape index: {}]
  %s6 = inlined_call_operand.vmem [shape: f32[1,2], index: 6, kind: input, shape index: {}]
  %s7 = inlined_call_operand.vmem [shape: f32[300,2], index: 7, kind: output, shape index: {0}]
  %s8 = inlined_call_operand.vmem [shape: f32[300,200], index: 8, kind: output, shape index: {1}]
  %9 = xla_tuple %s7, %s8
  %s10 = sld [smem:[#allocation0]]
  $region143: #{tpu_custom_call.1} parent=0
    _
  %s12 = ssub.s32 1, %s10
  %s13 = scalar_select 0, %s12, %s10
  $region1: #{tpu_custom_call.1} parent=0
    #allocation2 [shape = 'u8[131072]{0}', space=vmem, size = 0x20000, scoped, tag = 'output window, operand 0']
    #allocation3 [shape = 'u8[262144]{0}', space=vmem, size = 0x40000, scoped, tag = 'output window, operand 1']
    loop: start=0, step=1, limit=5
    $region2: #{tpu_custom_call.1} parent=1 // loop_pre_header
      _
    $region3: #{tpu_custom_call.1} parent=1 // loop_header
      %s15 = sphi 0, %s19
      %p16 = scmp.ge.s32.totalorder %s15, 5
      %s25 = sphi 0, %s27
      %s28 = sphi 0, %s25
      %s29 = sphi 0, %s28
      %s45 = sphi 0, %s29
      %s49 = sphi 0, %s49
      %s51 = sphi 0, %s49
      %s52 = sphi 0, %s51
      %s66 = sphi 0, %s52
      %s70 = sphi 0, %s70
      %s72 = sphi 0, %s70
      %s73 = sphi 0, %s72
      %s87 = sphi 0, %s73
      %s91 = sphi 0, %s91
      %s93 = sphi 0, %s91
      %s94 = sphi 0, %s93
      %s108 = sphi 0, %s94
      %s112 = sphi 0, %s112
      %s114 = sphi 0, %s112
      %s115 = sphi 0, %s114
      %s129 = sphi 0, %s115
      %s133 = sphi 0, %s133
      %s135 = sphi 0, %s133
      %s136 = sphi 0, %s135
      %s150 = sphi 0, %s136
      %s154 = sphi 0, %s154
      %s156 = sphi 0, %s154
      %s157 = sphi 0, %s156
      %s171 = sphi 0, %s157
      %s177 = sphi 0, %s179
      %s180 = sphi 0, %s177
      %s181 = sphi 0, %s180
      %s197 = sphi 0, %s181
      %s203 = sphi 0, %s205
      %s206 = sphi 0, %s203
      %s207 = sphi 0, %s206
      %s223 = sphi 0, %s207
    $region4: #{tpu_custom_call.1} parent=1 // loop_header_branch
      %18 = sbr.rel (%p16) target = $region8
    $region5: #{tpu_custom_call.1} parent=1 // loop_body
      %s20 = ssub.s32 %s15, 1
      %s21 = ssub.s32 %s15, 2
      %s22 = sadd.s32 %s15, 1
      %s23 = ssub.s32 %s15, %s22
      %p24 = scmp.eq.s32.totalorder %s23, 0
      %s26 = sadd.s32 %s25, 1
      %s27 = scalar_select %p24, %s25, %s26
      %p30 = pneg %p24
      %p31 = scmp.eq.s32.totalorder %s15, 2
      %p32 = por %p30, %p31
      %p33 = scmp.ne.s32.totalorder %s25, %s28
      %p34 = scmp.eq.s32.totalorder %s15, 0
      %p35 = por %p33, %p34
      %p36 = scmp.ne.s32.totalorder %s25, %s28
      %p37 = scmp.eq.s32.totalorder %s20, 2
      %p38 = por %p36, %p37
      %p39 = scmp.ne.s32.totalorder %s28, %s29
      %p40 = scmp.eq.s32.totalorder %s20, 0
      %p41 = por %p39, %p40
      %p42 = scmp.ne.s32.totalorder %s28, %s29
      %p43 = scmp.eq.s32.totalorder %s21, 2
      %p44 = por %p42, %p43
      %p46 = scmp.ne.s32.totalorder %s29, %s45
      %p47 = scmp.eq.s32.totalorder %s21, 0
      %p48 = por %p46, %p47
      %s50 = sadd.s32 %s49, 1
      %p53 = scmp.eq.s32.totalorder %s15, 2
      %p54 = scmp.ne.s32.totalorder %s49, %s51
      %p55 = scmp.eq.s32.totalorder %s15, 0
      %p56 = por %p54, %p55
      %p57 = scmp.ne.s32.totalorder %s49, %s51
      %p58 = scmp.eq.s32.totalorder %s20, 2
      %p59 = por %p57, %p58
      %p60 = scmp.ne.s32.totalorder %s51, %s52
      %p61 = scmp.eq.s32.totalorder %s20, 0
      %p62 = por %p60, %p61
      %p63 = scmp.ne.s32.totalorder %s51, %s52
      %p64 = scmp.eq.s32.totalorder %s21, 2
      %p65 = por %p63, %p64
      %p67 = scmp.ne.s32.totalorder %s52, %s66
      %p68 = scmp.eq.s32.totalorder %s21, 0
      %p69 = por %p67, %p68
      %s71 = sadd.s32 %s70, 1
      %p74 = scmp.eq.s32.totalorder %s15, 2
      %p75 = scmp.ne.s32.totalorder %s70, %s72
      %p76 = scmp.eq.s32.totalorder %s15, 0
      %p77 = por %p75, %p76
      %p78 = scmp.ne.s32.totalorder %s70, %s72
      %p79 = scmp.eq.s32.totalorder %s20, 2
      %p80 = por %p78, %p79
      %p81 = scmp.ne.s32.totalorder %s72, %s73
      %p82 = scmp.eq.s32.totalorder %s20, 0
      %p83 = por %p81, %p82
      %p84 = scmp.ne.s32.totalorder %s72, %s73
      %p85 = scmp.eq.s32.totalorder %s21, 2
      %p86 = por %p84, %p85
      %p88 = scmp.ne.s32.totalorder %s73, %s87
      %p89 = scmp.eq.s32.totalorder %s21, 0
      %p90 = por %p88, %p89
      %s92 = sadd.s32 %s91, 1
      %p95 = scmp.eq.s32.totalorder %s15, 2
      %p96 = scmp.ne.s32.totalorder %s91, %s93
      %p97 = scmp.eq.s32.totalorder %s15, 0
      %p98 = por %p96, %p97
      %p99 = scmp.ne.s32.totalorder %s91, %s93
      %p100 = scmp.eq.s32.totalorder %s20, 2
      %p101 = por %p99, %p100
      %p102 = scmp.ne.s32.totalorder %s93, %s94
      %p103 = scmp.eq.s32.totalorder %s20, 0
      %p104 = por %p102, %p103
      %p105 = scmp.ne.s32.totalorder %s93, %s94
      %p106 = scmp.eq.s32.totalorder %s21, 2
      %p107 = por %p105, %p106
      %p109 = scmp.ne.s32.totalorder %s94, %s108
      %p110 = scmp.eq.s32.totalorder %s21, 0
      %p111 = por %p109, %p110
      %s113 = sadd.s32 %s112, 1
      %p116 = scmp.eq.s32.totalorder %s15, 2
      %p117 = scmp.ne.s32.totalorder %s112, %s114
      %p118 = scmp.eq.s32.totalorder %s15, 0
      %p119 = por %p117, %p118
      %p120 = scmp.ne.s32.totalorder %s112, %s114
      %p121 = scmp.eq.s32.totalorder %s20, 2
      %p122 = por %p120, %p121
      %p123 = scmp.ne.s32.totalorder %s114, %s115
      %p124 = scmp.eq.s32.totalorder %s20, 0
      %p125 = por %p123, %p124
      %p126 = scmp.ne.s32.totalorder %s114, %s115
      %p127 = scmp.eq.s32.totalorder %s21, 2
      %p128 = por %p126, %p127
      %p130 = scmp.ne.s32.totalorder %s115, %s129
      %p131 = scmp.eq.s32.totalorder %s21, 0
      %p132 = por %p130, %p131
      %s134 = sadd.s32 %s133, 1
      %p137 = scmp.eq.s32.totalorder %s15, 2
      %p138 = scmp.ne.s32.totalorder %s133, %s135
      %p139 = scmp.eq.s32.totalorder %s15, 0
      %p140 = por %p138, %p139
      %p141 = scmp.ne.s32.totalorder %s133, %s135
      %p142 = scmp.eq.s32.totalorder %s20, 2
      %p143 = por %p141, %p142
      %p144 = scmp.ne.s32.totalorder %s135, %s136
      %p145 = scmp.eq.s32.totalorder %s20, 0
      %p146 = por %p144, %p145
      %p147 = scmp.ne.s32.totalorder %s135, %s136
      %p148 = scmp.eq.s32.totalorder %s21, 2
      %p149 = por %p147, %p148
      %p151 = scmp.ne.s32.totalorder %s136, %s150
      %p152 = scmp.eq.s32.totalorder %s21, 0
      %p153 = por %p151, %p152
      %s155 = sadd.s32 %s154, 1
      %p158 = scmp.eq.s32.totalorder %s15, 2
      %p159 = scmp.ne.s32.totalorder %s154, %s156
      %p160 = scmp.eq.s32.totalorder %s15, 0
      %p161 = por %p159, %p160
      %p162 = scmp.ne.s32.totalorder %s154, %s156
      %p163 = scmp.eq.s32.totalorder %s20, 2
      %p164 = por %p162, %p163
      %p165 = scmp.ne.s32.totalorder %s156, %s157
      %p166 = scmp.eq.s32.totalorder %s20, 0
      %p167 = por %p165, %p166
      %p168 = scmp.ne.s32.totalorder %s156, %s157
      %p169 = scmp.eq.s32.totalorder %s21, 2
      %p170 = por %p168, %p169
      %p172 = scmp.ne.s32.totalorder %s157, %s171
      %p173 = scmp.eq.s32.totalorder %s21, 0
      %p174 = por %p172, %p173
      %s175 = ssub.s32 %s15, %s22
      %p176 = scmp.eq.s32.totalorder %s175, 0
      %s178 = sadd.s32 %s177, 1
      %s179 = scalar_select %p176, %s177, %s178
      %p182 = pneg %p176
      %p183 = scmp.eq.s32.totalorder %s15, 2
      %p184 = por %p182, %p183
      %p185 = scmp.ne.s32.totalorder %s177, %s180
      %p186 = scmp.eq.s32.totalorder %s15, 0
      %p187 = por %p185, %p186
      %p188 = scmp.ne.s32.totalorder %s177, %s180
      %p189 = scmp.eq.s32.totalorder %s20, 2
      %p190 = por %p188, %p189
      %p191 = scmp.ne.s32.totalorder %s180, %s181
      %p192 = scmp.eq.s32.totalorder %s20, 0
      %p193 = por %p191, %p192
      %p194 = scmp.ne.s32.totalorder %s180, %s181
      %p195 = scmp.eq.s32.totalorder %s21, 2
      %p196 = por %p194, %p195
      %p198 = scmp.ne.s32.totalorder %s181, %s197
      %p199 = scmp.eq.s32.totalorder %s21, 0
      %p200 = por %p198, %p199
      %s201 = ssub.s32 %s15, %s22
      %p202 = scmp.eq.s32.totalorder %s201, 0
      %s204 = sadd.s32 %s203, 1
      %s205 = scalar_select %p202, %s203, %s204
      %p208 = pneg %p202
      %p209 = scmp.eq.s32.totalorder %s15, 2
      %p210 = por %p208, %p209
      %p211 = scmp.ne.s32.totalorder %s203, %s206
      %p212 = scmp.eq.s32.totalorder %s15, 0
      %p213 = por %p211, %p212
      %p214 = scmp.ne.s32.totalorder %s203, %s206
      %p215 = scmp.eq.s32.totalorder %s20, 2
      %p216 = por %p214, %p215
      %p217 = scmp.ne.s32.totalorder %s206, %s207
      %p218 = scmp.eq.s32.totalorder %s20, 0
      %p219 = por %p217, %p218
      %p220 = scmp.ne.s32.totalorder %s206, %s207
      %p221 = scmp.eq.s32.totalorder %s21, 2
      %p222 = por %p220, %p221
      %p224 = scmp.ne.s32.totalorder %s207, %s223
      %p225 = scmp.eq.s32.totalorder %s21, 0
      %p226 = por %p224, %p225
      %p227 = scmp.le.s32.totalorder 1, %s15
      %p228 = scmp.lt.s32.totalorder %s15, 4
      %p229 = pnand %p227, %p228
      %p230 = pneg %p229
      // Predicated region
      $region9: #{tpu_custom_call.1} parent=5 // pred_check
        _
      $region10: #{tpu_custom_call.1} parent=5 // pred_check_branch
        %232 = sbr.rel (%p229) target = $region12
      $region11: #{tpu_custom_call.1} parent=5 // pred_region
        %s233 = ssub.s32 %s15, 1
        // Predicated region
        $region13: #{tpu_custom_call.1} parent=11 // pred_check
          %p234 = pneg %p62
        $region14: #{tpu_custom_call.1} parent=11 // pred_check_branch
          %236 = sbr.rel (%p234) target = $region16
        $region15: #{tpu_custom_call.1} parent=11 // pred_region
          _
        $region16: #{tpu_custom_call.1} parent=11 // pred_fallthru
          _
        // Predicated region
        $region17: #{tpu_custom_call.1} parent=11 // pred_check
          %p237 = pneg %p83
        $region18: #{tpu_custom_call.1} parent=11 // pred_check_branch
          %239 = sbr.rel (%p237) target = $region20
        $region19: #{tpu_custom_call.1} parent=11 // pred_region
          _
        $region20: #{tpu_custom_call.1} parent=11 // pred_fallthru
          _
        // Predicated region
        $region21: #{tpu_custom_call.1} parent=11 // pred_check
          %p240 = pneg %p104
        $region22: #{tpu_custom_call.1} parent=11 // pred_check_branch
          %242 = sbr.rel (%p240) target = $region24
        $region23: #{tpu_custom_call.1} parent=11 // pred_region
          _
        $region24: #{tpu_custom_call.1} parent=11 // pred_fallthru
          _
        // Predicated region
        $region25: #{tpu_custom_call.1} parent=11 // pred_check
          %p243 = pneg %p125
        $region26: #{tpu_custom_call.1} parent=11 // pred_check_branch
          %245 = sbr.rel (%p243) target = $region28
        $region27: #{tpu_custom_call.1} parent=11 // pred_region
          _
        $region28: #{tpu_custom_call.1} parent=11 // pred_fallthru
          _
        // Predicated region
        $region29: #{tpu_custom_call.1} parent=11 // pred_check
          %p246 = pneg %p146
        $region30: #{tpu_custom_call.1} parent=11 // pred_check_branch
          %248 = sbr.rel (%p246) target = $region32
        $region31: #{tpu_custom_call.1} parent=11 // pred_region
          _
        $region32: #{tpu_custom_call.1} parent=11 // pred_fallthru
          _
        // Predicated region
        $region33: #{tpu_custom_call.1} parent=11 // pred_check
          %p249 = pneg %p167
        $region34: #{tpu_custom_call.1} parent=11 // pred_check_branch
          %251 = sbr.rel (%p249) target = $region36
        $region35: #{tpu_custom_call.1} parent=11 // pred_region
          _
        $region36: #{tpu_custom_call.1} parent=11 // pred_fallthru
          _
      $region12: #{tpu_custom_call.1} parent=5 // pred_fallthru
        _
      %p252 = scmp.lt.s32.totalorder %s15, 3
      // Predicated region
      $region37: #{tpu_custom_call.1} parent=5 // pred_check
        %p253 = pneg %p252
      $region38: #{tpu_custom_call.1} parent=5 // pred_check_branch
        %255 = sbr.rel (%p253) target = $region40
      $region39: #{tpu_custom_call.1} parent=5 // pred_region
        // Predicated region
        $region41: #{tpu_custom_call.1} parent=39 // pred_check
          %p256 = pneg %p35
        $region42: #{tpu_custom_call.1} parent=39 // pred_check_branch
          %258 = sbr.rel (%p256) target = $region44
        $region43: #{tpu_custom_call.1} parent=39 // pred_region
          %s259 = smul.u32 16, %s15
          %s260 = ssub.s32 38, %s259
          %p261 = scmp.lt.s32.totalorder %s260, 16
          %s262 = scalar_select %p261, %s260, 16
          %s263 = smul.u32 128, %s262
          %p264 = scmp.lt.s32.totalorder %s259, 37
          %s265 = scalar_select %p264, %s259, 37
          %s266 = smul.addr %s265, 8
          %s267 = scalar_lea.vmem %s0, %s266
          %s268 = smul.u32 16, %s15
          %s269 = ssub.s32 38, %s268
          %p270 = scmp.lt.s32.totalorder %s269, 16
          %s271 = scalar_select %p270, %s269, 16
          %s272 = smul.u32 128, %s271
        $region44: #{tpu_custom_call.1} parent=39 // pred_fallthru
          _
      $region40: #{tpu_custom_call.1} parent=5 // pred_fallthru
        _
      %p273 = scmp.le.s32.totalorder 1, %s15
      %p274 = scmp.lt.s32.totalorder %s15, 4
      %p275 = pnand %p273, %p274
      %p276 = pneg %p275
      // Predicated region
      $region45: #{tpu_custom_call.1} parent=5 // pred_check
        _
      $region46: #{tpu_custom_call.1} parent=5 // pred_check_branch
        %278 = sbr.rel (%p275) target = $region48
      $region47: #{tpu_custom_call.1} parent=5 // pred_region
        %s279 = ssub.s32 %s15, 1
        %s280 = smul.u32 16, %s20
        %s281 = ssub.s32 38, %s280
        %p282 = scmp.lt.s32.totalorder %s281, 16
        %s283 = scalar_select %p282, %s281, 16
        %s284 = smul.u32 128, %s283
        %p285 = scmp.lt.s32.totalorder %s280, 37
        %s286 = scalar_select %p285, %s280, 37
        %s287 = smul.addr %s286, 8
        %s288 = scalar_lea.vmem %s0, %s287
        %p289 = pneg %p41
        %p290 = pneg %p38
        %p291 = pneg %p62
        %p292 = pneg %p59
        %p293 = pneg %p83
        %p294 = pneg %p80
        %p295 = pneg %p104
        %p296 = pneg %p101
        %p297 = pneg %p125
        %p298 = pneg %p122
        %p299 = pneg %p146
        %p300 = pneg %p143
        %p301 = pneg %p167
        %p302 = pneg %p164
        %p303 = pneg %p193
        %p304 = pneg %p190
        %s305 = sand.u32 %s180, 1
        %s306 = sand.u32 %s180, 1
        %s307 = smul.addr %s306, 128
        %s308 = scalar_lea.vmem [#allocation2], %s307
        %p309 = pneg %p219
        %p310 = pneg %p216
        %s311 = sand.u32 %s206, 1
        %s312 = sand.u32 %s206, 1
        %s313 = smul.addr %s312, 256
        %s314 = scalar_lea.vmem [#allocation3], %s313
        %s315 = smul.u32 16, %s20
        %s316 = ssub.s32 38, %s315
        %p317 = scmp.lt.s32.totalorder %s316, 16
        %s318 = scalar_select %p317, %s316, 16
        %s319 = smul.u32 128, %s318
        %p320 = scmp.lt.s32.totalorder %s315, 37
        %s321 = scalar_select %p320, %s315, 37
        %s322 = smul.addr %s321, 8
        %s323 = scalar_lea.vmem %s0, %s322
        %s324 = smul.u32 16, %s20
        %s325 = ssub.s32 38, %s324
        %p326 = scmp.lt.s32.totalorder %s325, 16
        %s327 = scalar_select %p326, %s325, 16
        %s328 = smul.u32 128, %s327
        %s329 = smul.u32 16, %s20
        %s330 = ssub.s32 38, %s329
        %p331 = scmp.lt.s32.totalorder %s330, 16
        %s332 = scalar_select %p331, %s330, 16
        %s333 = smul.u32 128, %s332
        %s334 = smul.u32 16, %s20
        %s335 = ssub.s32 38, %s334
        %p336 = scmp.lt.s32.totalorder %s335, 16
        %s337 = scalar_select %p336, %s335, 16
        %s338 = smul.u32 128, %s337
        %s339 = smul.u32 %s338, 2
        %v340 = vld [vmem:[%s323] sm:$0xff]
        %v341 = vld [vmem:[%s323 + $0x8] sm:$0xff]
        %v342 = vld [vmem:[%s323 + $0x10] sm:$0xff]
        %v343 = vld [vmem:[%s323 + $0x18] sm:$0xff]
        %v344 = vld [vmem:[%s323 + $0x20] sm:$0xff]
        %v345 = vld [vmem:[%s323 + $0x28] sm:$0xff]
        %v346 = vld [vmem:[%s323 + $0x30] sm:$0xff]
        %v347 = vld [vmem:[%s323 + $0x38] sm:$0xff]
        %v348 = vld [vmem:[%s323 + $0x40] sm:$0xff]
        %v349 = vld [vmem:[%s323 + $0x48] sm:$0xff]
        %v350 = vld [vmem:[%s323 + $0x50] sm:$0xff]
        %v351 = vld [vmem:[%s323 + $0x58] sm:$0xff]
        %v352 = vld [vmem:[%s323 + $0x60] sm:$0xff]
        %v353 = vld [vmem:[%s323 + $0x68] sm:$0xff]
        %v354 = vld [vmem:[%s323 + $0x70] sm:$0xff]
        %v355 = vld [vmem:[%s323 + $0x78] sm:$0xff]
        %v356 = vld [vmem:[%s1] sm:$0xff]
        %v357 = vld [vmem:[%s1 + $0x8] sm:$0xff]
        %v358 = vld [vmem:[%s1 + $0x10] sm:$0xff]
        %v359 = vld [vmem:[%s1 + $0x18] sm:$0xff]
        %v360 = vld [vmem:[%s2] sm:$0x1]
        %v362 = vlaneseq
        %v363 = vshrl.u32 %v362, 7
        %v364 = vsub.s32 0, %v363
        %v365 = vrot.slane %v360, %v364
        %vm367 = vcmask 261120
        %v369 = vsel %vm367, %v340, 0
        %v372 = vsel %vm367, %v341, 0
        %v375 = vsel %vm367, %v342, 0
        %v378 = vsel %vm367, %v343, 0
        %v381 = vsel %vm367, %v344, 0
        %v384 = vsel %vm367, %v345, 0
        %v387 = vsel %vm367, %v346, 0
        %v390 = vsel %vm367, %v347, 0
        %v393 = vsel %vm367, %v348, 0
        %v396 = vsel %vm367, %v349, 0
        %v399 = vsel %vm367, %v350, 0
        %v402 = vsel %vm367, %v351, 0
        %v405 = vsel %vm367, %v352, 0
        %v408 = vsel %vm367, %v353, 0
        %v411 = vsel %vm367, %v354, 0
        %v414 = vsel %vm367, %v355, 0
        %416 = vmatprep.subr.mxu0 0.0
        %417 = vmatpush1.msra.mxu0 %v356
        %418 = vmatprep.subr.mxu0 0.0
        %419 = vmatpush1.msra.mxu0 %v357
        %420 = vmatprep.subr.mxu0 0.0
        %421 = vmatpush1.msra.mxu0 %v358
        %422 = vmatprep.subr.mxu0 0.0
        %423 = vmatpush1.msra.mxu0 %v359
        %424 = vmatprep.subr.mxu0 0.0
        %425 = vmatpush1.msra.mxu0 0.0
        %426 = vmatprep.subr.mxu0 0.0
        %427 = vmatpush1.msra.mxu0 0.0
        %428 = vmatprep.subr.mxu0 0.0
        %429 = vmatpush1.msra.mxu0 0.0
        %430 = vmatprep.subr.mxu0 0.0
        %431 = vmatpush1.msra.mxu0 0.0
        %432 = vmatprep.subr.mxu0 0.0
        %433 = vmatpush1.msra.mxu0 0.0
        %434 = vmatprep.subr.mxu0 0.0
        %435 = vmatpush1.msra.mxu0 0.0
        %436 = vmatprep.subr.mxu0 0.0
        %437 = vmatpush1.msra.mxu0 0.0
        %438 = vmatprep.subr.mxu0 0.0
        %439 = vmatpush1.msra.mxu0 0.0
        %440 = vmatprep.subr.mxu0 0.0
        %441 = vmatpush1.msra.mxu0 0.0
        %442 = vmatprep.subr.mxu0 0.0
        %443 = vmatpush1.msra.mxu0 0.0
        %444 = vmatprep.subr.mxu0 0.0
        %445 = vmatpush1.msra.mxu0 0.0
        %446 = vmatprep.subr.mxu0 0.0
        %447 = vmatpush1.msra.mxu0 0.0
        %448 = vmatprep.subr.mxu0 0.0
        %449 = vmatpush1.msra.mxu0 0.0
        %450 = vmatprep.subr.mxu0 0.0
        %451 = vmatpush1.msra.mxu0 0.0
        %452 = vmatprep.subr.mxu0 0.0
        %453 = vmatpush1.msra.mxu0 0.0
        %454 = vmatprep.subr.mxu0 0.0
        %455 = vmatpush1.msra.mxu0 0.0
        %456 = vmatprep.subr.mxu0 0.0
        %457 = vmatpush1.msra.mxu0 0.0
        %458 = vmatprep.subr.mxu0 0.0
        %459 = vmatpush1.msra.mxu0 0.0
        %460 = vmatprep.subr.mxu0 0.0
        %461 = vmatpush1.msra.mxu0 0.0
        %462 = vmatprep.subr.mxu0 0.0
        %463 = vmatpush1.msra.mxu0 0.0
        %464 = vmatprep.subr.mxu0 0.0
        %465 = vmatpush1.msra.mxu0 0.0
        %466 = vmatprep.subr.mxu0 0.0
        %467 = vmatpush1.msra.mxu0 0.0
        %468 = vmatprep.subr.mxu0 0.0
        %469 = vmatpush1.msra.mxu0 0.0
        %470 = vmatprep.subr.mxu0 0.0
        %471 = vmatpush1.msra.mxu0 0.0
        %472 = vmatprep.subr.mxu0 0.0
        %473 = vmatpush1.msra.mxu0 0.0
        %474 = vmatprep.subr.mxu0 0.0
        %475 = vmatpush1.msra.mxu0 0.0
        %476 = vmatprep.subr.mxu0 0.0
        %477 = vmatpush1.msra.mxu0 0.0
        %478 = vmatprep.subr.mxu0 0.0
        %479 = vmatpush1.msra.mxu0 0.0
        %480 = vmatprep.mubr.f32.mxu0 0.0
        %481 = vmatmul.mubr.f32.gmra.mrb[0].mxu0 %v369
        %v482 = vpop.f32.mrb[0].mxu0
        %v483 = vadd.f32 %v365, %v482
        %v484 = vpop.f32.mrb[0].mxu0
        %485 = vmatprep.mubr.f32.mxu0 0.0
        %486 = vmatmul.mubr.f32.gmra.mrb[0].mxu0 %v372
        %v487 = vpop.f32.mrb[0].mxu0
        %v488 = vadd.f32 %v365, %v487
        %v489 = vpop.f32.mrb[0].mxu0
        %490 = vmatprep.mubr.f32.mxu0 0.0
        %491 = vmatmul.mubr.f32.gmra.mrb[0].mxu0 %v375
        %v492 = vpop.f32.mrb[0].mxu0
        %v493 = vadd.f32 %v365, %v492
        %v494 = vpop.f32.mrb[0].mxu0
        %495 = vmatprep.mubr.f32.mxu0 0.0
        %496 = vmatmul.mubr.f32.gmra.mrb[0].mxu0 %v378
        %v497 = vpop.f32.mrb[0].mxu0
        %v498 = vadd.f32 %v365, %v497
        %v499 = vpop.f32.mrb[0].mxu0
        %500 = vmatprep.mubr.f32.mxu0 0.0
        %501 = vmatmul.mubr.f32.gmra.mrb[0].mxu0 %v381
        %v502 = vpop.f32.mrb[0].mxu0
        %v503 = vadd.f32 %v365, %v502
        %v504 = vpop.f32.mrb[0].mxu0
        %505 = vmatprep.mubr.f32.mxu0 0.0
        %506 = vmatmul.mubr.f32.gmra.mrb[0].mxu0 %v384
        %v507 = vpop.f32.mrb[0].mxu0
        %v508 = vadd.f32 %v365, %v507
        %v509 = vpop.f32.mrb[0].mxu0
        %510 = vmatprep.mubr.f32.mxu0 0.0
        %511 = vmatmul.mubr.f32.gmra.mrb[0].mxu0 %v387
        %v512 = vpop.f32.mrb[0].mxu0
        %v513 = vadd.f32 %v365, %v512
        %v514 = vpop.f32.mrb[0].mxu0
        %515 = vmatprep.mubr.f32.mxu0 0.0
        %516 = vmatmul.mubr.f32.gmra.mrb[0].mxu0 %v390
        %v517 = vpop.f32.mrb[0].mxu0
        %v518 = vadd.f32 %v365, %v517
        %v519 = vpop.f32.mrb[0].mxu0
        %520 = vmatprep.mubr.f32.mxu0 0.0
        %521 = vmatmul.mubr.f32.gmra.mrb[0].mxu0 %v393
        %v522 = vpop.f32.mrb[0].mxu0
        %v523 = vadd.f32 %v365, %v522
        %v524 = vpop.f32.mrb[0].mxu0
        %525 = vmatprep.mubr.f32.mxu0 0.0
        %526 = vmatmul.mubr.f32.gmra.mrb[0].mxu0 %v396
        %v527 = vpop.f32.mrb[0].mxu0
        %v528 = vadd.f32 %v365, %v527
        %v529 = vpop.f32.mrb[0].mxu0
        %530 = vmatprep.mubr.f32.mxu0 0.0
        %531 = vmatmul.mubr.f32.gmra.mrb[0].mxu0 %v399
        %v532 = vpop.f32.mrb[0].mxu0
        %v533 = vadd.f32 %v365, %v532
        %v534 = vpop.f32.mrb[0].mxu0
        %535 = vmatprep.mubr.f32.mxu0 0.0
        %536 = vmatmul.mubr.f32.gmra.mrb[0].mxu0 %v402
        %v537 = vpop.f32.mrb[0].mxu0
        %v538 = vadd.f32 %v365, %v537
        %v539 = vpop.f32.mrb[0].mxu0
        %540 = vmatprep.mubr.f32.mxu0 0.0
        %541 = vmatmul.mubr.f32.gmra.mrb[0].mxu0 %v405
        %v542 = vpop.f32.mrb[0].mxu0
        %v543 = vadd.f32 %v365, %v542
        %v544 = vpop.f32.mrb[0].mxu0
        %545 = vmatprep.mubr.f32.mxu0 0.0
        %546 = vmatmul.mubr.f32.gmra.mrb[0].mxu0 %v408
        %v547 = vpop.f32.mrb[0].mxu0
        %v548 = vadd.f32 %v365, %v547
        %v549 = vpop.f32.mrb[0].mxu0
        %550 = vmatprep.mubr.f32.mxu0 0.0
        %551 = vmatmul.mubr.f32.gmra.mrb[0].mxu0 %v411
        %v552 = vpop.f32.mrb[0].mxu0
        %v553 = vadd.f32 %v365, %v552
        %v554 = vpop.f32.mrb[0].mxu0
        %555 = vmatprep.mubr.f32.mxu0 0.0
        %556 = vmatmul.mubr.f32.gmra.mrb[0].mxu0 %v414
        %v557 = vpop.f32.mrb[0].mxu0
        %v558 = vadd.f32 %v365, %v557
        %v559 = vpop.f32.mrb[0].mxu0
        %560 = vdwg.mxu0
        %v561 = vld [vmem:[%s3] sm:$0xff]
        %v562 = vld [vmem:[%s3 + $0x8] sm:$0xff]
        %v563 = vld [vmem:[%s3 + $0x10] sm:$0xff]
        %v564 = vld [vmem:[%s3 + $0x18] sm:$0xff]
        %v565 = vld [vmem:[%s4] sm:$0x3]
        %v567 = vlaneseq
        %v568 = vshrl.u32 %v567, 7
        %v569 = vsub.s32 0, %v568
        %v570 = vrot.slane %v565, %v569
        %v571 = vlaneseq
        %v572 = vshrl.u32 %v571, 7
        %v573 = vsub.s32 1, %v572
        %v574 = vrot.slane %v565, %v573
        %vm577 = vcmask 130048
        %v579 = vsel %vm577, %v483, 0
        %v582 = vsel %vm577, %v488, 0
        %v585 = vsel %vm577, %v493, 0
        %v588 = vsel %vm577, %v498, 0
        %v591 = vsel %vm577, %v503, 0
        %v594 = vsel %vm577, %v508, 0
        %v597 = vsel %vm577, %v513, 0
        %v600 = vsel %vm577, %v518, 0
        %v603 = vsel %vm577, %v523, 0
        %v606 = vsel %vm577, %v528, 0
        %v609 = vsel %vm577, %v533, 0
        %v612 = vsel %vm577, %v538, 0
        %v615 = vsel %vm577, %v543, 0
        %v618 = vsel %vm577, %v548, 0
        %v621 = vsel %vm577, %v553, 0
        %v624 = vsel %vm577, %v558, 0
        %626 = vmatprep.subr.mxu0 %v562
        %627 = vmatpush1.msra.mxu0 %v561
        %628 = vmatprep.subr.mxu0 %v564
        %629 = vmatpush1.msra.mxu0 %v563
        %630 = vmatprep.subr.mxu0 0.0
        %631 = vmatpush1.msra.mxu0 0.0
        %632 = vmatprep.subr.mxu0 0.0
        %633 = vmatpush1.msra.mxu0 0.0
        %634 = vmatprep.subr.mxu0 0.0
        %635 = vmatpush1.msra.mxu0 0.0
        %636 = vmatprep.subr.mxu0 0.0
        %637 = vmatpush1.msra.mxu0 0.0
        %638 = vmatprep.subr.mxu0 0.0
        %639 = vmatpush1.msra.mxu0 0.0
        %640 = vmatprep.subr.mxu0 0.0
        %641 = vmatpush1.msra.mxu0 0.0
        %642 = vmatprep.subr.mxu0 0.0
        %643 = vmatpush1.msra.mxu0 0.0
        %644 = vmatprep.subr.mxu0 0.0
        %645 = vmatpush1.msra.mxu0 0.0
        %646 = vmatprep.subr.mxu0 0.0
        %647 = vmatpush1.msra.mxu0 0.0
        %648 = vmatprep.subr.mxu0 0.0
        %649 = vmatpush1.msra.mxu0 0.0
        %650 = vmatprep.subr.mxu0 0.0
        %651 = vmatpush1.msra.mxu0 0.0
        %652 = vmatprep.subr.mxu0 0.0
        %653 = vmatpush1.msra.mxu0 0.0
        %654 = vmatprep.subr.mxu0 0.0
        %655 = vmatpush1.msra.mxu0 0.0
        %656 = vmatprep.subr.mxu0 0.0
        %657 = vmatpush1.msra.mxu0 0.0
        %658 = vmatprep.subr.mxu0 0.0
        %659 = vmatpush1.msra.mxu0 0.0
        %660 = vmatprep.subr.mxu0 0.0
        %661 = vmatpush1.msra.mxu0 0.0
        %662 = vmatprep.subr.mxu0 0.0
        %663 = vmatpush1.msra.mxu0 0.0
        %664 = vmatprep.subr.mxu0 0.0
        %665 = vmatpush1.msra.mxu0 0.0
        %666 = vmatprep.subr.mxu0 0.0
        %667 = vmatpush1.msra.mxu0 0.0
        %668 = vmatprep.subr.mxu0 0.0
        %669 = vmatpush1.msra.mxu0 0.0
        %670 = vmatprep.subr.mxu0 0.0
        %671 = vmatpush1.msra.mxu0 0.0
        %672 = vmatprep.subr.mxu0 0.0
        %673 = vmatpush1.msra.mxu0 0.0
        %674 = vmatprep.subr.mxu0 0.0
        %675 = vmatpush1.msra.mxu0 0.0
        %676 = vmatprep.subr.mxu0 0.0
        %677 = vmatpush1.msra.mxu0 0.0
        %678 = vmatprep.subr.mxu0 0.0
        %679 = vmatpush1.msra.mxu0 0.0
        %680 = vmatprep.subr.mxu0 0.0
        %681 = vmatpush1.msra.mxu0 0.0
        %682 = vmatprep.subr.mxu0 0.0
        %683 = vmatpush1.msra.mxu0 0.0
        %684 = vmatprep.subr.mxu0 0.0
        %685 = vmatpush1.msra.mxu0 0.0
        %686 = vmatprep.subr.mxu0 0.0
        %687 = vmatpush1.msra.mxu0 0.0
        %688 = vmatprep.subr.mxu0 0.0
        %689 = vmatpush1.msra.mxu0 0.0
        %690 = vmatprep.mubr.f32.mxu0 0.0
        %691 = vmatmul.mubr.f32.gmra.mrb[0].mxu0 %v579
        %v692 = vpop.f32.mrb[0].mxu0
        %v693 = vadd.f32 %v570, %v692
        %v694 = vpop.f32.mrb[0].mxu0
        %v695 = vadd.f32 %v574, %v694
        %696 = vmatprep.mubr.f32.mxu0 0.0
        %697 = vmatmul.mubr.f32.gmra.mrb[0].mxu0 %v582
        %v698 = vpop.f32.mrb[0].mxu0
        %v699 = vadd.f32 %v570, %v698
        %v700 = vpop.f32.mrb[0].mxu0
        %v701 = vadd.f32 %v574, %v700
        %702 = vmatprep.mubr.f32.mxu0 0.0
        %703 = vmatmul.mubr.f32.gmra.mrb[0].mxu0 %v585
        %v704 = vpop.f32.mrb[0].mxu0
        %v705 = vadd.f32 %v570, %v704
        %v706 = vpop.f32.mrb[0].mxu0
        %v707 = vadd.f32 %v574, %v706
        %708 = vmatprep.mubr.f32.mxu0 0.0
        %709 = vmatmul.mubr.f32.gmra.mrb[0].mxu0 %v588
        %v710 = vpop.f32.mrb[0].mxu0
        %v711 = vadd.f32 %v570, %v710
        %v712 = vpop.f32.mrb[0].mxu0
        %v713 = vadd.f32 %v574, %v712
        %714 = vmatprep.mubr.f32.mxu0 0.0
        %715 = vmatmul.mubr.f32.gmra.mrb[0].mxu0 %v591
        %v716 = vpop.f32.mrb[0].mxu0
        %v717 = vadd.f32 %v570, %v716
        %v718 = vpop.f32.mrb[0].mxu0
        %v719 = vadd.f32 %v574, %v718
        %720 = vmatprep.mubr.f32.mxu0 0.0
        %721 = vmatmul.mubr.f32.gmra.mrb[0].mxu0 %v594
        %v722 = vpop.f32.mrb[0].mxu0
        %v723 = vadd.f32 %v570, %v722
        %v724 = vpop.f32.mrb[0].mxu0
        %v725 = vadd.f32 %v574, %v724
        %726 = vmatprep.mubr.f32.mxu0 0.0
        %727 = vmatmul.mubr.f32.gmra.mrb[0].mxu0 %v597
        %v728 = vpop.f32.mrb[0].mxu0
        %v729 = vadd.f32 %v570, %v728
        %v730 = vpop.f32.mrb[0].mxu0
        %v731 = vadd.f32 %v574, %v730
        %732 = vmatprep.mubr.f32.mxu0 0.0
        %733 = vmatmul.mubr.f32.gmra.mrb[0].mxu0 %v600
        %v734 = vpop.f32.mrb[0].mxu0
        %v735 = vadd.f32 %v570, %v734
        %v736 = vpop.f32.mrb[0].mxu0
        %v737 = vadd.f32 %v574, %v736
        %738 = vmatprep.mubr.f32.mxu0 0.0
        %739 = vmatmul.mubr.f32.gmra.mrb[0].mxu0 %v603
        %v740 = vpop.f32.mrb[0].mxu0
        %v741 = vadd.f32 %v570, %v740
        %v742 = vpop.f32.mrb[0].mxu0
        %v743 = vadd.f32 %v574, %v742
        %744 = vmatprep.mubr.f32.mxu0 0.0
        %745 = vmatmul.mubr.f32.gmra.mrb[0].mxu0 %v606
        %v746 = vpop.f32.mrb[0].mxu0
        %v747 = vadd.f32 %v570, %v746
        %v748 = vpop.f32.mrb[0].mxu0
        %v749 = vadd.f32 %v574, %v748
        %750 = vmatprep.mubr.f32.mxu0 0.0
        %751 = vmatmul.mubr.f32.gmra.mrb[0].mxu0 %v609
        %v752 = vpop.f32.mrb[0].mxu0
        %v753 = vadd.f32 %v570, %v752
        %v754 = vpop.f32.mrb[0].mxu0
        %v755 = vadd.f32 %v574, %v754
        %756 = vmatprep.mubr.f32.mxu0 0.0
        %757 = vmatmul.mubr.f32.gmra.mrb[0].mxu0 %v612
        %v758 = vpop.f32.mrb[0].mxu0
        %v759 = vadd.f32 %v570, %v758
        %v760 = vpop.f32.mrb[0].mxu0
        %v761 = vadd.f32 %v574, %v760
        %762 = vmatprep.mubr.f32.mxu0 0.0
        %763 = vmatmul.mubr.f32.gmra.mrb[0].mxu0 %v615
        %v764 = vpop.f32.mrb[0].mxu0
        %v765 = vadd.f32 %v570, %v764
        %v766 = vpop.f32.mrb[0].mxu0
        %v767 = vadd.f32 %v574, %v766
        %768 = vmatprep.mubr.f32.mxu0 0.0
        %769 = vmatmul.mubr.f32.gmra.mrb[0].mxu0 %v618
        %v770 = vpop.f32.mrb[0].mxu0
        %v771 = vadd.f32 %v570, %v770
        %v772 = vpop.f32.mrb[0].mxu0
        %v773 = vadd.f32 %v574, %v772
        %774 = vmatprep.mubr.f32.mxu0 0.0
        %775 = vmatmul.mubr.f32.gmra.mrb[0].mxu0 %v621
        %v776 = vpop.f32.mrb[0].mxu0
        %v777 = vadd.f32 %v570, %v776
        %v778 = vpop.f32.mrb[0].mxu0
        %v779 = vadd.f32 %v574, %v778
        %780 = vmatprep.mubr.f32.mxu0 0.0
        %781 = vmatmul.mubr.f32.gmra.mrb[0].mxu0 %v624
        %v782 = vpop.f32.mrb[0].mxu0
        %v783 = vadd.f32 %v570, %v782
        %v784 = vpop.f32.mrb[0].mxu0
        %v785 = vadd.f32 %v574, %v784
        %786 = vdwg.mxu0
        %v787 = vld [vmem:[%s5] sm:$0xff]
        %v788 = vld [vmem:[%s5 + $0x8] sm:$0xff]
        %v789 = vld [vmem:[%s5 + $0x10] sm:$0xff]
        %v790 = vld [vmem:[%s5 + $0x18] sm:$0xff]
        %v791 = vld [vmem:[%s5 + $0x20] sm:$0xff]
        %v792 = vld [vmem:[%s5 + $0x28] sm:$0xff]
        %v793 = vld [vmem:[%s5 + $0x30] sm:$0xff]
        %v794 = vld [vmem:[%s5 + $0x38] sm:$0xff]
        %v795 = vld [vmem:[%s5 + $0x40] sm:$0xff]
        %v796 = vld [vmem:[%s5 + $0x48] sm:$0xff]
        %v797 = vld [vmem:[%s5 + $0x50] sm:$0xff]
        %v798 = vld [vmem:[%s5 + $0x58] sm:$0xff]
        %v799 = vld [vmem:[%s5 + $0x60] sm:$0xff]
        %v800 = vld [vmem:[%s5 + $0x68] sm:$0xff]
        %v801 = vld [vmem:[%s5 + $0x70] sm:$0xff]
        %v802 = vld [vmem:[%s5 + $0x78] sm:$0xff]
        %v803 = vld [vmem:[%s5 + $0x80] sm:$0xff]
        %v804 = vld [vmem:[%s5 + $0x88] sm:$0xff]
        %v805 = vld [vmem:[%s5 + $0x90] sm:$0xff]
        %v806 = vld [vmem:[%s5 + $0x98] sm:$0xff]
        %v807 = vld [vmem:[%s5 + $0xa0] sm:$0xff]
        %v808 = vld [vmem:[%s5 + $0xa8] sm:$0xff]
        %v809 = vld [vmem:[%s5 + $0xb0] sm:$0xff]
        %v810 = vld [vmem:[%s5 + $0xb8] sm:$0xff]
        %v811 = vld [vmem:[%s5 + $0xc0] sm:$0xff]
        %v812 = vld [vmem:[%s6] sm:$0x1]
        %v814 = vlaneseq
        %v815 = vshrl.u32 %v814, 7
        %v816 = vsub.s32 0, %v815
        %v817 = vrot.slane %v812, %v816
        %vm819 = vcmask 588800
        %v821 = vsel %vm819, %v695, 0
        %v824 = vsel %vm819, %v701, 0
        %v827 = vsel %vm819, %v707, 0
        %v830 = vsel %vm819, %v713, 0
        %v833 = vsel %vm819, %v719, 0
        %v836 = vsel %vm819, %v725, 0
        %v839 = vsel %vm819, %v731, 0
        %v842 = vsel %vm819, %v737, 0
        %v845 = vsel %vm819, %v743, 0
        %v848 = vsel %vm819, %v749, 0
        %v851 = vsel %vm819, %v755, 0
        %v854 = vsel %vm819, %v761, 0
        %v857 = vsel %vm819, %v767, 0
        %v860 = vsel %vm819, %v773, 0
        %v863 = vsel %vm819, %v779, 0
        %v866 = vsel %vm819, %v785, 0
        %868 = vmatprep.subr.mxu0 0.0
        %869 = vmatpush1.msra.mxu0 %v787
        %870 = vmatprep.subr.mxu0 0.0
        %871 = vmatpush1.msra.mxu0 %v788
        %872 = vmatprep.subr.mxu0 0.0
        %873 = vmatpush1.msra.mxu0 %v789
        %874 = vmatprep.subr.mxu0 0.0
        %875 = vmatpush1.msra.mxu0 %v790
        %876 = vmatprep.subr.mxu0 0.0
        %877 = vmatpush1.msra.mxu0 %v791
        %878 = vmatprep.subr.mxu0 0.0
        %879 = vmatpush1.msra.mxu0 %v792
        %880 = vmatprep.subr.mxu0 0.0
        %881 = vmatpush1.msra.mxu0 %v793
        %882 = vmatprep.subr.mxu0 0.0
        %883 = vmatpush1.msra.mxu0 %v794
        %884 = vmatprep.subr.mxu0 0.0
        %885 = vmatpush1.msra.mxu0 %v795
        %886 = vmatprep.subr.mxu0 0.0
        %887 = vmatpush1.msra.mxu0 %v796
        %888 = vmatprep.subr.mxu0 0.0
        %889 = vmatpush1.msra.mxu0 %v797
        %890 = vmatprep.subr.mxu0 0.0
        %891 = vmatpush1.msra.mxu0 %v798
        %892 = vmatprep.subr.mxu0 0.0
        %893 = vmatpush1.msra.mxu0 %v799
        %894 = vmatprep.subr.mxu0 0.0
        %895 = vmatpush1.msra.mxu0 %v800
        %896 = vmatprep.subr.mxu0 0.0
        %897 = vmatpush1.msra.mxu0 %v801
        %898 = vmatprep.subr.mxu0 0.0
        %899 = vmatpush1.msra.mxu0 %v802
        %900 = vmatprep.subr.mxu0 0.0
        %901 = vmatpush1.msra.mxu0 %v803
        %902 = vmatprep.subr.mxu0 0.0
        %903 = vmatpush1.msra.mxu0 %v804
        %904 = vmatprep.subr.mxu0 0.0
        %905 = vmatpush1.msra.mxu0 %v805
        %906 = vmatprep.subr.mxu0 0.0
        %907 = vmatpush1.msra.mxu0 %v806
        %908 = vmatprep.subr.mxu0 0.0
        %909 = vmatpush1.msra.mxu0 %v807
        %910 = vmatprep.subr.mxu0 0.0
        %911 = vmatpush1.msra.mxu0 %v808
        %912 = vmatprep.subr.mxu0 0.0
        %913 = vmatpush1.msra.mxu0 %v809
        %914 = vmatprep.subr.mxu0 0.0
        %915 = vmatpush1.msra.mxu0 %v810
        %916 = vmatprep.subr.mxu0 0.0
        %917 = vmatpush1.msra.mxu0 %v811
        %918 = vmatprep.subr.mxu0 0.0
        %919 = vmatpush1.msra.mxu0 0.0
        %920 = vmatprep.subr.mxu0 0.0
        %921 = vmatpush1.msra.mxu0 0.0
        %922 = vmatprep.subr.mxu0 0.0
        %923 = vmatpush1.msra.mxu0 0.0
        %924 = vmatprep.subr.mxu0 0.0
        %925 = vmatpush1.msra.mxu0 0.0
        %926 = vmatprep.subr.mxu0 0.0
        %927 = vmatpush1.msra.mxu0 0.0
        %928 = vmatprep.subr.mxu0 0.0
        %929 = vmatpush1.msra.mxu0 0.0
        %930 = vmatprep.subr.mxu0 0.0
        %931 = vmatpush1.msra.mxu0 0.0
        %932 = vmatprep.mubr.f32.mxu0 %v821
        %933 = vmatmul.mubr.f32.gmra.mrb[0].mxu0 %v693
        %v934 = vpop.f32.mrb[0].mxu0
        %v935 = vadd.f32 %v817, %v934
        %v936 = vpop.f32.mrb[0].mxu0
        %937 = vmatprep.mubr.f32.mxu0 %v824
        %938 = vmatmul.mubr.f32.gmra.mrb[0].mxu0 %v699
        %v939 = vpop.f32.mrb[0].mxu0
        %v940 = vadd.f32 %v817, %v939
        %v941 = vpop.f32.mrb[0].mxu0
        %942 = vmatprep.mubr.f32.mxu0 %v827
        %943 = vmatmul.mubr.f32.gmra.mrb[0].mxu0 %v705
        %v944 = vpop.f32.mrb[0].mxu0
        %v945 = vadd.f32 %v817, %v944
        %v946 = vpop.f32.mrb[0].mxu0
        %947 = vmatprep.mubr.f32.mxu0 %v830
        %948 = vmatmul.mubr.f32.gmra.mrb[0].mxu0 %v711
        %v949 = vpop.f32.mrb[0].mxu0
        %v950 = vadd.f32 %v817, %v949
        %v951 = vpop.f32.mrb[0].mxu0
        %952 = vmatprep.mubr.f32.mxu0 %v833
        %953 = vmatmul.mubr.f32.gmra.mrb[0].mxu0 %v717
        %v954 = vpop.f32.mrb[0].mxu0
        %v955 = vadd.f32 %v817, %v954
        %v956 = vpop.f32.mrb[0].mxu0
        %957 = vmatprep.mubr.f32.mxu0 %v836
        %958 = vmatmul.mubr.f32.gmra.mrb[0].mxu0 %v723
        %v959 = vpop.f32.mrb[0].mxu0
        %v960 = vadd.f32 %v817, %v959
        %v961 = vpop.f32.mrb[0].mxu0
        %962 = vmatprep.mubr.f32.mxu0 %v839
        %963 = vmatmul.mubr.f32.gmra.mrb[0].mxu0 %v729
        %v964 = vpop.f32.mrb[0].mxu0
        %v965 = vadd.f32 %v817, %v964
        %v966 = vpop.f32.mrb[0].mxu0
        %967 = vmatprep.mubr.f32.mxu0 %v842
        %968 = vmatmul.mubr.f32.gmra.mrb[0].mxu0 %v735
        %v969 = vpop.f32.mrb[0].mxu0
        %v970 = vadd.f32 %v817, %v969
        %v971 = vpop.f32.mrb[0].mxu0
        %972 = vmatprep.mubr.f32.mxu0 %v845
        %973 = vmatmul.mubr.f32.gmra.mrb[0].mxu0 %v741
        %v974 = vpop.f32.mrb[0].mxu0
        %v975 = vadd.f32 %v817, %v974
        %v976 = vpop.f32.mrb[0].mxu0
        %977 = vmatprep.mubr.f32.mxu0 %v848
        %978 = vmatmul.mubr.f32.gmra.mrb[0].mxu0 %v747
        %v979 = vpop.f32.mrb[0].mxu0
        %v980 = vadd.f32 %v817, %v979
        %v981 = vpop.f32.mrb[0].mxu0
        %982 = vmatprep.mubr.f32.mxu0 %v851
        %983 = vmatmul.mubr.f32.gmra.mrb[0].mxu0 %v753
        %v984 = vpop.f32.mrb[0].mxu0
        %v985 = vadd.f32 %v817, %v984
        %v986 = vpop.f32.mrb[0].mxu0
        %987 = vmatprep.mubr.f32.mxu0 %v854
        %988 = vmatmul.mubr.f32.gmra.mrb[0].mxu0 %v759
        %v989 = vpop.f32.mrb[0].mxu0
        %v990 = vadd.f32 %v817, %v989
        %v991 = vpop.f32.mrb[0].mxu0
        %992 = vmatprep.mubr.f32.mxu0 %v857
        %993 = vmatmul.mubr.f32.gmra.mrb[0].mxu0 %v765
        %v994 = vpop.f32.mrb[0].mxu0
        %v995 = vadd.f32 %v817, %v994
        %v996 = vpop.f32.mrb[0].mxu0
        %997 = vmatprep.mubr.f32.mxu0 %v860
        %998 = vmatmul.mubr.f32.gmra.mrb[0].mxu0 %v771
        %v999 = vpop.f32.mrb[0].mxu0
        %v1000 = vadd.f32 %v817, %v999
        %v1001 = vpop.f32.mrb[0].mxu0
        %1002 = vmatprep.mubr.f32.mxu0 %v863
        %1003 = vmatmul.mubr.f32.gmra.mrb[0].mxu0 %v777
        %v1004 = vpop.f32.mrb[0].mxu0
        %v1005 = vadd.f32 %v817, %v1004
        %v1006 = vpop.f32.mrb[0].mxu0
        %1007 = vmatprep.mubr.f32.mxu0 %v866
        %1008 = vmatmul.mubr.f32.gmra.mrb[0].mxu0 %v783
        %v1009 = vpop.f32.mrb[0].mxu0
        %v1010 = vadd.f32 %v817, %v1009
        %v1011 = vpop.f32.mrb[0].mxu0
        %1012 = vdwg.mxu0
        %1013 = vst [vmem:[%s314] sm:$0xff] %v693
        %1014 = vst.msk [vmem:[%s314 + $0x8] sm:$0xff] %vm819, %v695
        %1015 = vst [vmem:[%s314 + $0x10] sm:$0xff] %v699
        %1016 = vst.msk [vmem:[%s314 + $0x18] sm:$0xff] %vm819, %v701
        %1017 = vst [vmem:[%s314 + $0x20] sm:$0xff] %v705
        %1018 = vst.msk [vmem:[%s314 + $0x28] sm:$0xff] %vm819, %v707
        %1019 = vst [vmem:[%s314 + $0x30] sm:$0xff] %v711
        %1020 = vst.msk [vmem:[%s314 + $0x38] sm:$0xff] %vm819, %v713
        %1021 = vst [vmem:[%s314 + $0x40] sm:$0xff] %v717
        %1022 = vst.msk [vmem:[%s314 + $0x48] sm:$0xff] %vm819, %v719
        %1023 = vst [vmem:[%s314 + $0x50] sm:$0xff] %v723
        %1024 = vst.msk [vmem:[%s314 + $0x58] sm:$0xff] %vm819, %v725
        %1025 = vst [vmem:[%s314 + $0x60] sm:$0xff] %v729
        %1026 = vst.msk [vmem:[%s314 + $0x68] sm:$0xff] %vm819, %v731
        %1027 = vst [vmem:[%s314 + $0x70] sm:$0xff] %v735
        %1028 = vst.msk [vmem:[%s314 + $0x78] sm:$0xff] %vm819, %v737
        %1029 = vst [vmem:[%s314 + $0x80] sm:$0xff] %v741
        %1030 = vst.msk [vmem:[%s314 + $0x88] sm:$0xff] %vm819, %v743
        %1031 = vst [vmem:[%s314 + $0x90] sm:$0xff] %v747
        %1032 = vst.msk [vmem:[%s314 + $0x98] sm:$0xff] %vm819, %v749
        %1033 = vst [vmem:[%s314 + $0xa0] sm:$0xff] %v753
        %1034 = vst.msk [vmem:[%s314 + $0xa8] sm:$0xff] %vm819, %v755
        %1035 = vst [vmem:[%s314 + $0xb0] sm:$0xff] %v759
        %1036 = vst.msk [vmem:[%s314 + $0xb8] sm:$0xff] %vm819, %v761
        %1037 = vst [vmem:[%s314 + $0xc0] sm:$0xff] %v765
        %1038 = vst.msk [vmem:[%s314 + $0xc8] sm:$0xff] %vm819, %v767
        %1039 = vst [vmem:[%s314 + $0xd0] sm:$0xff] %v771
        %1040 = vst.msk [vmem:[%s314 + $0xd8] sm:$0xff] %vm819, %v773
        %1041 = vst [vmem:[%s314 + $0xe0] sm:$0xff] %v777
        %1042 = vst.msk [vmem:[%s314 + $0xe8] sm:$0xff] %vm819, %v779
        %1043 = vst [vmem:[%s314 + $0xf0] sm:$0xff] %v783
        %1044 = vst.msk [vmem:[%s314 + $0xf8] sm:$0xff] %vm819, %v785
        %vm1045 = vcmask 15360
        %1046 = vst.msk [vmem:[%s308] sm:$0xff] %vm1045, %v935
        %1047 = vst.msk [vmem:[%s308 + $0x8] sm:$0xff] %vm1045, %v940
        %1048 = vst.msk [vmem:[%s308 + $0x10] sm:$0xff] %vm1045, %v945
        %1049 = vst.msk [vmem:[%s308 + $0x18] sm:$0xff] %vm1045, %v950
        %1050 = vst.msk [vmem:[%s308 + $0x20] sm:$0xff] %vm1045, %v955
        %1051 = vst.msk [vmem:[%s308 + $0x28] sm:$0xff] %vm1045, %v960
        %1052 = vst.msk [vmem:[%s308 + $0x30] sm:$0xff] %vm1045, %v965
        %1053 = vst.msk [vmem:[%s308 + $0x38] sm:$0xff] %vm1045, %v970
        %1054 = vst.msk [vmem:[%s308 + $0x40] sm:$0xff] %vm1045, %v975
        %1055 = vst.msk [vmem:[%s308 + $0x48] sm:$0xff] %vm1045, %v980
        %1056 = vst.msk [vmem:[%s308 + $0x50] sm:$0xff] %vm1045, %v985
        %1057 = vst.msk [vmem:[%s308 + $0x58] sm:$0xff] %vm1045, %v990
        %1058 = vst.msk [vmem:[%s308 + $0x60] sm:$0xff] %vm1045, %v995
        %1059 = vst.msk [vmem:[%s308 + $0x68] sm:$0xff] %vm1045, %v1000
        %1060 = vst.msk [vmem:[%s308 + $0x70] sm:$0xff] %vm1045, %v1005
        %1061 = vst.msk [vmem:[%s308 + $0x78] sm:$0xff] %vm1045, %v1010
        %s1062 = sand.u32 %s180, 1
        %s1063 = sand.u32 %s180, 1
        %s1064 = smul.addr %s1063, 128
        %s1065 = scalar_lea.vmem [#allocation2], %s1064
        %s1066 = sand.u32 %s206, 1
        %s1067 = sand.u32 %s206, 1
        %s1068 = smul.addr %s1067, 256
        %s1069 = scalar_lea.vmem [#allocation3], %s1068
        // Predicated region
        $region49: #{tpu_custom_call.1} parent=47 // pred_check
          %p1070 = pneg %p190
        $region50: #{tpu_custom_call.1} parent=47 // pred_check_branch
          %1072 = sbr.rel (%p1070) target = $region52
        $region51: #{tpu_custom_call.1} parent=47 // pred_region
          %s1073 = smul.u32 16, %s20
          %s1074 = ssub.s32 38, %s1073
          %p1075 = scmp.lt.s32.totalorder %s1074, 16
          %s1076 = scalar_select %p1075, %s1074, 16
          %s1077 = smul.u32 128, %s1076
          %p1078 = scmp.ne.s32.totalorder 0, %s1077
          %s1079 = smul.addr %s1073, 8
          %s1080 = scalar_lea.vmem %s7, %s1079
          // Predicated region
          $region53: #{tpu_custom_call.1} parent=51 // pred_check
            %p1081 = pneg %p1078
          $region54: #{tpu_custom_call.1} parent=51 // pred_check_branch
            %1083 = sbr.rel (%p1081) target = $region56
          $region55: #{tpu_custom_call.1} parent=51 // pred_region
            // Predicated region
            $region57: #{tpu_custom_call.1} parent=55 // pred_check
              _
            $region58: #{tpu_custom_call.1} parent=55 // pred_check_branch
              %1085 = sbr.rel (0) target = $region60
            $region59: #{tpu_custom_call.1} parent=55 // pred_region
              // Predicated region
              $region79: #{tpu_custom_call.1} parent=59 // pred_check
                _
              $region80: #{tpu_custom_call.1} parent=59 // pred_check_branch
                %1164 = sbr.rel (0) target = $region82
              $region81: #{tpu_custom_call.1} parent=59 // pred_region
                %s1165 = sshrl.u32 %s1076, 4
                // While loop
                $region83: #{tpu_custom_call.1} parent=81 // loop_pre_header
                  _
                $region84: #{tpu_custom_call.1} parent=81 // loop_header
                  %s1167 = sphi 0, %s1169
                  %p1168 = scmp.ge.s32.totalorder %s1167, %s1165
                  %s1172 = sphi 0, %s1209
                  %s1173 = sphi %s1065, %s1212
                  %s1174 = sphi %s1080, %s1213
                $region85: #{tpu_custom_call.1} parent=81 // loop_header_branch
                  %1171 = sbr.rel (%p1168) target = $region89
                $region86: #{tpu_custom_call.1} parent=81 // loop_body
                  %v1175 = vld [vmem:[%s1173] sm:$0xff]
                  %1176 = vst [vmem:[%s1174] sm:$0xff] %v1175
                  %v1177 = vld [vmem:[%s1173 + $0x8] sm:$0xff]
                  %1178 = vst [vmem:[%s1174 + $0x8] sm:$0xff] %v1177
                  %v1179 = vld [vmem:[%s1173 + $0x10] sm:$0xff]
                  %1180 = vst [vmem:[%s1174 + $0x10] sm:$0xff] %v1179
                  %v1181 = vld [vmem:[%s1173 + $0x18] sm:$0xff]
                  %1182 = vst [vmem:[%s1174 + $0x18] sm:$0xff] %v1181
                  %v1183 = vld [vmem:[%s1173 + $0x20] sm:$0xff]
                  %1184 = vst [vmem:[%s1174 + $0x20] sm:$0xff] %v1183
                  %v1185 = vld [vmem:[%s1173 + $0x28] sm:$0xff]
                  %1186 = vst [vmem:[%s1174 + $0x28] sm:$0xff] %v1185
                  %v1187 = vld [vmem:[%s1173 + $0x30] sm:$0xff]
                  %1188 = vst [vmem:[%s1174 + $0x30] sm:$0xff] %v1187
                  %v1189 = vld [vmem:[%s1173 + $0x38] sm:$0xff]
                  %1190 = vst [vmem:[%s1174 + $0x38] sm:$0xff] %v1189
                  %v1191 = vld [vmem:[%s1173 + $0x40] sm:$0xff]
                  %1192 = vst [vmem:[%s1174 + $0x40] sm:$0xff] %v1191
                  %v1193 = vld [vmem:[%s1173 + $0x48] sm:$0xff]
                  %1194 = vst [vmem:[%s1174 + $0x48] sm:$0xff] %v1193
                  %v1195 = vld [vmem:[%s1173 + $0x50] sm:$0xff]
                  %1196 = vst [vmem:[%s1174 + $0x50] sm:$0xff] %v1195
                  %v1197 = vld [vmem:[%s1173 + $0x58] sm:$0xff]
                  %1198 = vst [vmem:[%s1174 + $0x58] sm:$0xff] %v1197
                  %v1199 = vld [vmem:[%s1173 + $0x60] sm:$0xff]
                  %1200 = vst [vmem:[%s1174 + $0x60] sm:$0xff] %v1199
                  %v1201 = vld [vmem:[%s1173 + $0x68] sm:$0xff]
                  %1202 = vst [vmem:[%s1174 + $0x68] sm:$0xff] %v1201
                  %v1203 = vld [vmem:[%s1173 + $0x70] sm:$0xff]
                  %1204 = vst [vmem:[%s1174 + $0x70] sm:$0xff] %v1203
                  %v1205 = vld [vmem:[%s1173 + $0x78] sm:$0xff]
                  %1206 = vst [vmem:[%s1174 + $0x78] sm:$0xff] %v1205
                  %s1207 = sadd.s32 1, %s1172
                  %p1208 = scmp.ge.s32.totalorder %s1207, %s1165
                  %s1209 = scalar_select %p1208, 0, %s1207
                  %s1210 = smul.u32 %s1209, 128
                  %s1211 = smul.u32 %s1209, 128
                  %s1212 = scalar_lea.vmem %s1065, %s1210 [#allocation2]
                  %s1213 = scalar_lea.vmem %s1080, %s1211
                $region87: #{tpu_custom_call.1} parent=81 // loop_footer
                  %s1169 = sadd.s32 %s1167, 1
                $region88: #{tpu_custom_call.1} parent=81 // loop_footer_branch
                  %1166 = sbr.rel target = $region84
                $region89: #{tpu_custom_call.1} parent=81 // loop_exit
                  _
                %s1214 = sshrl.u32 %s1076, 4
                %s1215 = sand.u32 %s1076, 15
                %s1216 = smul.u32 %s1214, 16
                %s1217 = smul.u32 8, %s1216
                %s1218 = scalar_lea.vmem %s1065, %s1217 [#allocation2]
                %s1219 = smul.u32 8, %s1216
                %s1220 = scalar_lea.vmem %s1080, %s1219
                // While loop
                $region90: #{tpu_custom_call.1} parent=81 // loop_pre_header
                  _
                $region91: #{tpu_custom_call.1} parent=81 // loop_header
                  %s1222 = sphi 0, %s1224
                  %p1223 = scmp.ge.s32.totalorder %s1222, %s1215
                  %s1227 = sphi 0, %s1234
                  %s1228 = sphi %s1218, %s1237
                  %s1229 = sphi %s1220, %s1238
                $region92: #{tpu_custom_call.1} parent=81 // loop_header_branch
                  %1226 = sbr.rel (%p1223) target = $region96
                $region93: #{tpu_custom_call.1} parent=81 // loop_body
                  %v1230 = vld [vmem:[%s1228] sm:$0xff]
                  %1231 = vst [vmem:[%s1229] sm:$0xff] %v1230
                  %s1232 = sadd.s32 1, %s1227
                  %p1233 = scmp.ge.s32.totalorder %s1232, %s1215
                  %s1234 = scalar_select %p1233, 0, %s1232
                  %s1235 = smul.u32 %s1234, 8
                  %s1236 = smul.u32 %s1234, 8
                  %s1237 = scalar_lea.vmem %s1218, %s1235 [#allocation2]
                  %s1238 = scalar_lea.vmem %s1220, %s1236
                $region94: #{tpu_custom_call.1} parent=81 // loop_footer
                  %s1224 = sadd.s32 %s1222, 1
                $region95: #{tpu_custom_call.1} parent=81 // loop_footer_branch
                  %1221 = sbr.rel target = $region91
                $region96: #{tpu_custom_call.1} parent=81 // loop_exit
                  _
              $region82: #{tpu_custom_call.1} parent=59 // pred_fallthru
                _
              // Predicated region
              $region97: #{tpu_custom_call.1} parent=59 // pred_check
                _
              $region98: #{tpu_custom_call.1} parent=59 // pred_check_branch
                %1240 = sbr.rel target = $region100
              $region99: #{tpu_custom_call.1} parent=59 // pred_region
                _
              $region100: #{tpu_custom_call.1} parent=59 // pred_fallthru
                _
            $region60: #{tpu_custom_call.1} parent=55 // pred_fallthru
              _
            // Predicated region
            $region61: #{tpu_custom_call.1} parent=55 // pred_check
              _
            $region62: #{tpu_custom_call.1} parent=55 // pred_check_branch
              %1087 = sbr.rel target = $region64
            $region63: #{tpu_custom_call.1} parent=55 // pred_region
              %s1089 = sshrl.u32 %s1076, 4
              // While loop
              $region65: #{tpu_custom_call.1} parent=63 // loop_pre_header
                _
              $region66: #{tpu_custom_call.1} parent=63 // loop_header
                %s1091 = sphi 0, %s1093
                %p1092 = scmp.ge.s32.totalorder %s1091, %s1089
                %s1096 = sphi 0, %s1133
                %s1097 = sphi %s1065, %s1136
                %s1098 = sphi %s1080, %s1137
              $region67: #{tpu_custom_call.1} parent=63 // loop_header_branch
                %1095 = sbr.rel (%p1092) target = $region71
              $region68: #{tpu_custom_call.1} parent=63 // loop_body
                %v1099 = vld [vmem:[%s1097] sm:$0xff]
                %1100 = vst [vmem:[%s1098] sm:$0xff] %v1099
                %v1101 = vld [vmem:[%s1097 + $0x8] sm:$0xff]
                %1102 = vst [vmem:[%s1098 + $0x8] sm:$0xff] %v1101
                %v1103 = vld [vmem:[%s1097 + $0x10] sm:$0xff]
                %1104 = vst [vmem:[%s1098 + $0x10] sm:$0xff] %v1103
                %v1105 = vld [vmem:[%s1097 + $0x18] sm:$0xff]
                %1106 = vst [vmem:[%s1098 + $0x18] sm:$0xff] %v1105
                %v1107 = vld [vmem:[%s1097 + $0x20] sm:$0xff]
                %1108 = vst [vmem:[%s1098 + $0x20] sm:$0xff] %v1107
                %v1109 = vld [vmem:[%s1097 + $0x28] sm:$0xff]
                %1110 = vst [vmem:[%s1098 + $0x28] sm:$0xff] %v1109
                %v1111 = vld [vmem:[%s1097 + $0x30] sm:$0xff]
                %1112 = vst [vmem:[%s1098 + $0x30] sm:$0xff] %v1111
                %v1113 = vld [vmem:[%s1097 + $0x38] sm:$0xff]
                %1114 = vst [vmem:[%s1098 + $0x38] sm:$0xff] %v1113
                %v1115 = vld [vmem:[%s1097 + $0x40] sm:$0xff]
                %1116 = vst [vmem:[%s1098 + $0x40] sm:$0xff] %v1115
                %v1117 = vld [vmem:[%s1097 + $0x48] sm:$0xff]
                %1118 = vst [vmem:[%s1098 + $0x48] sm:$0xff] %v1117
                %v1119 = vld [vmem:[%s1097 + $0x50] sm:$0xff]
                %1120 = vst [vmem:[%s1098 + $0x50] sm:$0xff] %v1119
                %v1121 = vld [vmem:[%s1097 + $0x58] sm:$0xff]
                %1122 = vst [vmem:[%s1098 + $0x58] sm:$0xff] %v1121
                %v1123 = vld [vmem:[%s1097 + $0x60] sm:$0xff]
                %1124 = vst [vmem:[%s1098 + $0x60] sm:$0xff] %v1123
                %v1125 = vld [vmem:[%s1097 + $0x68] sm:$0xff]
                %1126 = vst [vmem:[%s1098 + $0x68] sm:$0xff] %v1125
                %v1127 = vld [vmem:[%s1097 + $0x70] sm:$0xff]
                %1128 = vst [vmem:[%s1098 + $0x70] sm:$0xff] %v1127
                %v1129 = vld [vmem:[%s1097 + $0x78] sm:$0xff]
                %1130 = vst [vmem:[%s1098 + $0x78] sm:$0xff] %v1129
                %s1131 = sadd.s32 1, %s1096
                %p1132 = scmp.ge.s32.totalorder %s1131, %s1089
                %s1133 = scalar_select %p1132, 0, %s1131
                %s1134 = smul.u32 %s1133, 128
                %s1135 = smul.u32 %s1133, 128
                %s1136 = scalar_lea.vmem %s1065, %s1134 [#allocation2]
                %s1137 = scalar_lea.vmem %s1080, %s1135
              $region69: #{tpu_custom_call.1} parent=63 // loop_footer
                %s1093 = sadd.s32 %s1091, 1
              $region70: #{tpu_custom_call.1} parent=63 // loop_footer_branch
                %1090 = sbr.rel target = $region66
              $region71: #{tpu_custom_call.1} parent=63 // loop_exit
                _
              %s1138 = sshrl.u32 %s1076, 4
              %s1139 = sand.u32 %s1076, 15
              %s1140 = smul.u32 %s1138, 16
              %s1141 = smul.u32 8, %s1140
              %s1142 = scalar_lea.vmem %s1065, %s1141 [#allocation2]
              %s1143 = smul.u32 8, %s1140
              %s1144 = scalar_lea.vmem %s1080, %s1143
              // While loop
              $region72: #{tpu_custom_call.1} parent=63 // loop_pre_header
                _
              $region73: #{tpu_custom_call.1} parent=63 // loop_header
                %s1146 = sphi 0, %s1148
                %p1147 = scmp.ge.s32.totalorder %s1146, %s1139
                %s1151 = sphi 0, %s1158
                %s1152 = sphi %s1142, %s1161
                %s1153 = sphi %s1144, %s1162
              $region74: #{tpu_custom_call.1} parent=63 // loop_header_branch
                %1150 = sbr.rel (%p1147) target = $region78
              $region75: #{tpu_custom_call.1} parent=63 // loop_body
                %v1154 = vld [vmem:[%s1152] sm:$0xff]
                %1155 = vst [vmem:[%s1153] sm:$0xff] %v1154
                %s1156 = sadd.s32 1, %s1151
                %p1157 = scmp.ge.s32.totalorder %s1156, %s1139
                %s1158 = scalar_select %p1157, 0, %s1156
                %s1159 = smul.u32 %s1158, 8
                %s1160 = smul.u32 %s1158, 8
                %s1161 = scalar_lea.vmem %s1142, %s1159 [#allocation2]
                %s1162 = scalar_lea.vmem %s1144, %s1160
              $region76: #{tpu_custom_call.1} parent=63 // loop_footer
                %s1148 = sadd.s32 %s1146, 1
              $region77: #{tpu_custom_call.1} parent=63 // loop_footer_branch
                %1145 = sbr.rel target = $region73
              $region78: #{tpu_custom_call.1} parent=63 // loop_exit
                _
            $region64: #{tpu_custom_call.1} parent=55 // pred_fallthru
              _
          $region56: #{tpu_custom_call.1} parent=51 // pred_fallthru
            _
          %1241 = vnop
        $region52: #{tpu_custom_call.1} parent=47 // pred_fallthru
          _
        // Predicated region
        $region101: #{tpu_custom_call.1} parent=47 // pred_check
          %p1242 = pneg %p216
        $region102: #{tpu_custom_call.1} parent=47 // pred_check_branch
          %1244 = sbr.rel (%p1242) target = $region104
        $region103: #{tpu_custom_call.1} parent=47 // pred_region
          %s1245 = smul.u32 16, %s20
          %s1246 = ssub.s32 38, %s1245
          %p1247 = scmp.lt.s32.totalorder %s1246, 16
          %s1248 = scalar_select %p1247, %s1246, 16
          %s1249 = smul.u32 128, %s1248
          %s1250 = smul.u32 %s1249, 2
          %p1251 = scmp.ne.s32.totalorder 0, %s1250
          %s1252 = smul.addr %s1245, 2
          %s1253 = smul.addr %s1252, 8
          %s1254 = scalar_lea.vmem %s8, %s1253
          // Predicated region
          $region105: #{tpu_custom_call.1} parent=103 // pred_check
            %p1255 = pneg %p1251
          $region106: #{tpu_custom_call.1} parent=103 // pred_check_branch
            %1257 = sbr.rel (%p1255) target = $region108
          $region107: #{tpu_custom_call.1} parent=103 // pred_region
            // Predicated region
            $region109: #{tpu_custom_call.1} parent=107 // pred_check
              _
            $region110: #{tpu_custom_call.1} parent=107 // pred_check_branch
              %1259 = sbr.rel (0) target = $region112
            $region111: #{tpu_custom_call.1} parent=107 // pred_region
              %s1260 = sshrl.u32 %s1248, 4
              // While loop
              $region113: #{tpu_custom_call.1} parent=111 // loop_pre_header
                _
              $region114: #{tpu_custom_call.1} parent=111 // loop_header
                %s1262 = sphi 0, %s1264
                %p1263 = scmp.ge.s32.totalorder %s1262, %s1260
                %s1267 = sphi 0, %s1336
                %s1268 = sphi %s1069, %s1339
                %s1269 = sphi %s1254, %s1340
              $region115: #{tpu_custom_call.1} parent=111 // loop_header_branch
                %1266 = sbr.rel (%p1263) target = $region119
              $region116: #{tpu_custom_call.1} parent=111 // loop_body
                %v1270 = vld [vmem:[%s1268] sm:$0xff]
                %1271 = vst [vmem:[%s1269] sm:$0xff] %v1270
                %v1272 = vld [vmem:[%s1268 + $0x10] sm:$0xff]
                %1273 = vst [vmem:[%s1269 + $0x10] sm:$0xff] %v1272
                %v1274 = vld [vmem:[%s1268 + $0x20] sm:$0xff]
                %1275 = vst [vmem:[%s1269 + $0x20] sm:$0xff] %v1274
                %v1276 = vld [vmem:[%s1268 + $0x30] sm:$0xff]
                %1277 = vst [vmem:[%s1269 + $0x30] sm:$0xff] %v1276
                %v1278 = vld [vmem:[%s1268 + $0x40] sm:$0xff]
                %1279 = vst [vmem:[%s1269 + $0x40] sm:$0xff] %v1278
                %v1280 = vld [vmem:[%s1268 + $0x50] sm:$0xff]
                %1281 = vst [vmem:[%s1269 + $0x50] sm:$0xff] %v1280
                %v1282 = vld [vmem:[%s1268 + $0x60] sm:$0xff]
                %1283 = vst [vmem:[%s1269 + $0x60] sm:$0xff] %v1282
                %v1284 = vld [vmem:[%s1268 + $0x70] sm:$0xff]
                %1285 = vst [vmem:[%s1269 + $0x70] sm:$0xff] %v1284
                %v1286 = vld [vmem:[%s1268 + $0x80] sm:$0xff]
                %1287 = vst [vmem:[%s1269 + $0x80] sm:$0xff] %v1286
                %v1288 = vld [vmem:[%s1268 + $0x90] sm:$0xff]
                %1289 = vst [vmem:[%s1269 + $0x90] sm:$0xff] %v1288
                %v1290 = vld [vmem:[%s1268 + $0xa0] sm:$0xff]
                %1291 = vst [vmem:[%s1269 + $0xa0] sm:$0xff] %v1290
                %v1292 = vld [vmem:[%s1268 + $0xb0] sm:$0xff]
                %1293 = vst [vmem:[%s1269 + $0xb0] sm:$0xff] %v1292
                %v1294 = vld [vmem:[%s1268 + $0xc0] sm:$0xff]
                %1295 = vst [vmem:[%s1269 + $0xc0] sm:$0xff] %v1294
                %v1296 = vld [vmem:[%s1268 + $0xd0] sm:$0xff]
                %1297 = vst [vmem:[%s1269 + $0xd0] sm:$0xff] %v1296
                %v1298 = vld [vmem:[%s1268 + $0xe0] sm:$0xff]
                %1299 = vst [vmem:[%s1269 + $0xe0] sm:$0xff] %v1298
                %v1300 = vld [vmem:[%s1268 + $0xf0] sm:$0xff]
                %1301 = vst [vmem:[%s1269 + $0xf0] sm:$0xff] %v1300
                %v1302 = vld [vmem:[%s1268 + $0x8] sm:$0xff]
                %1303 = vst [vmem:[%s1269 + $0x8] sm:$0xff] %v1302
                %v1304 = vld [vmem:[%s1268 + $0x18] sm:$0xff]
                %1305 = vst [vmem:[%s1269 + $0x18] sm:$0xff] %v1304
                %v1306 = vld [vmem:[%s1268 + $0x28] sm:$0xff]
                %1307 = vst [vmem:[%s1269 + $0x28] sm:$0xff] %v1306
                %v1308 = vld [vmem:[%s1268 + $0x38] sm:$0xff]
                %1309 = vst [vmem:[%s1269 + $0x38] sm:$0xff] %v1308
                %v1310 = vld [vmem:[%s1268 + $0x48] sm:$0xff]
                %1311 = vst [vmem:[%s1269 + $0x48] sm:$0xff] %v1310
                %v1312 = vld [vmem:[%s1268 + $0x58] sm:$0xff]
                %1313 = vst [vmem:[%s1269 + $0x58] sm:$0xff] %v1312
                %v1314 = vld [vmem:[%s1268 + $0x68] sm:$0xff]
                %1315 = vst [vmem:[%s1269 + $0x68] sm:$0xff] %v1314
                %v1316 = vld [vmem:[%s1268 + $0x78] sm:$0xff]
                %1317 = vst [vmem:[%s1269 + $0x78] sm:$0xff] %v1316
                %v1318 = vld [vmem:[%s1268 + $0x88] sm:$0xff]
                %1319 = vst [vmem:[%s1269 + $0x88] sm:$0xff] %v1318
                %v1320 = vld [vmem:[%s1268 + $0x98] sm:$0xff]
                %1321 = vst [vmem:[%s1269 + $0x98] sm:$0xff] %v1320
                %v1322 = vld [vmem:[%s1268 + $0xa8] sm:$0xff]
                %1323 = vst [vmem:[%s1269 + $0xa8] sm:$0xff] %v1322
                %v1324 = vld [vmem:[%s1268 + $0xb8] sm:$0xff]
                %1325 = vst [vmem:[%s1269 + $0xb8] sm:$0xff] %v1324
                %v1326 = vld [vmem:[%s1268 + $0xc8] sm:$0xff]
                %1327 = vst [vmem:[%s1269 + $0xc8] sm:$0xff] %v1326
                %v1328 = vld [vmem:[%s1268 + $0xd8] sm:$0xff]
                %1329 = vst [vmem:[%s1269 + $0xd8] sm:$0xff] %v1328
                %v1330 = vld [vmem:[%s1268 + $0xe8] sm:$0xff]
                %1331 = vst [vmem:[%s1269 + $0xe8] sm:$0xff] %v1330
                %v1332 = vld [vmem:[%s1268 + $0xf8] sm:$0xff]
                %1333 = vst [vmem:[%s1269 + $0xf8] sm:$0xff] %v1332
                %s1334 = sadd.s32 1, %s1267
                %p1335 = scmp.ge.s32.totalorder %s1334, %s1260
                %s1336 = scalar_select %p1335, 0, %s1334
                %s1337 = smul.u32 %s1336, 256
                %s1338 = smul.u32 %s1336, 256
                %s1339 = scalar_lea.vmem %s1069, %s1337 [#allocation3]
                %s1340 = scalar_lea.vmem %s1254, %s1338
              $region117: #{tpu_custom_call.1} parent=111 // loop_footer
                %s1264 = sadd.s32 %s1262, 1
              $region118: #{tpu_custom_call.1} parent=111 // loop_footer_branch
                %1261 = sbr.rel target = $region114
              $region119: #{tpu_custom_call.1} parent=111 // loop_exit
                _
              %s1341 = sshrl.u32 %s1248, 4
              %s1342 = sand.u32 %s1248, 15
              %s1343 = smul.u32 %s1341, 16
              %s1344 = smul.u32 16, %s1343
              %s1345 = scalar_lea.vmem %s1069, %s1344 [#allocation3]
              %s1346 = smul.u32 16, %s1343
              %s1347 = scalar_lea.vmem %s1254, %s1346
              // While loop
              $region120: #{tpu_custom_call.1} parent=111 // loop_pre_header
                _
              $region121: #{tpu_custom_call.1} parent=111 // loop_header
                %s1349 = sphi 0, %s1351
                %p1350 = scmp.ge.s32.totalorder %s1349, %s1342
                %s1354 = sphi 0, %s1363
                %s1355 = sphi %s1345, %s1366
                %s1356 = sphi %s1347, %s1367
              $region122: #{tpu_custom_call.1} parent=111 // loop_header_branch
                %1353 = sbr.rel (%p1350) target = $region126
              $region123: #{tpu_custom_call.1} parent=111 // loop_body
                %v1357 = vld [vmem:[%s1355] sm:$0xff]
                %1358 = vst [vmem:[%s1356] sm:$0xff] %v1357
                %v1359 = vld [vmem:[%s1355 + $0x8] sm:$0xff]
                %1360 = vst [vmem:[%s1356 + $0x8] sm:$0xff] %v1359
                %s1361 = sadd.s32 1, %s1354
                %p1362 = scmp.ge.s32.totalorder %s1361, %s1342
                %s1363 = scalar_select %p1362, 0, %s1361
                %s1364 = smul.u32 %s1363, 16
                %s1365 = smul.u32 %s1363, 16
                %s1366 = scalar_lea.vmem %s1345, %s1364 [#allocation3]
                %s1367 = scalar_lea.vmem %s1347, %s1365
              $region124: #{tpu_custom_call.1} parent=111 // loop_footer
                %s1351 = sadd.s32 %s1349, 1
              $region125: #{tpu_custom_call.1} parent=111 // loop_footer_branch
                %1348 = sbr.rel target = $region121
              $region126: #{tpu_custom_call.1} parent=111 // loop_exit
                _
            $region112: #{tpu_custom_call.1} parent=107 // pred_fallthru
              _
            // Predicated region
            $region127: #{tpu_custom_call.1} parent=107 // pred_check
              _
            $region128: #{tpu_custom_call.1} parent=107 // pred_check_branch
              %1369 = sbr.rel target = $region130
            $region129: #{tpu_custom_call.1} parent=107 // pred_region
              _
            $region130: #{tpu_custom_call.1} parent=107 // pred_fallthru
              _
          $region108: #{tpu_custom_call.1} parent=103 // pred_fallthru
            _
          %1370 = vnop
        $region104: #{tpu_custom_call.1} parent=47 // pred_fallthru
          _
      $region48: #{tpu_custom_call.1} parent=5 // pred_fallthru
        _
      %p1371 = scmp.le.s32.totalorder 2, %s15
      // Predicated region
      $region131: #{tpu_custom_call.1} parent=5 // pred_check
        %p1372 = pneg %p1371
      $region132: #{tpu_custom_call.1} parent=5 // pred_check_branch
        %1374 = sbr.rel (%p1372) target = $region134
      $region133: #{tpu_custom_call.1} parent=5 // pred_region
        %s1375 = ssub.s32 %s15, 2
        // Predicated region
        $region135: #{tpu_custom_call.1} parent=133 // pred_check
          %p1376 = pneg %p196
        $region136: #{tpu_custom_call.1} parent=133 // pred_check_branch
          %1378 = sbr.rel (%p1376) target = $region138
        $region137: #{tpu_custom_call.1} parent=133 // pred_region
          %s1379 = sand.u32 %s181, 1
          %s1380 = sand.u32 %s181, 1
          %s1381 = smul.addr %s1380, 128
          %s1382 = scalar_lea.vmem [#allocation2], %s1381
        $region138: #{tpu_custom_call.1} parent=133 // pred_fallthru
          _
        // Predicated region
        $region139: #{tpu_custom_call.1} parent=133 // pred_check
          %p1383 = pneg %p222
        $region140: #{tpu_custom_call.1} parent=133 // pred_check_branch
          %1385 = sbr.rel (%p1383) target = $region142
        $region141: #{tpu_custom_call.1} parent=133 // pred_region
          %s1386 = sand.u32 %s207, 1
          %s1387 = sand.u32 %s207, 1
          %s1388 = smul.addr %s1387, 256
          %s1389 = scalar_lea.vmem [#allocation3], %s1388
        $region142: #{tpu_custom_call.1} parent=133 // pred_fallthru
          _
      $region134: #{tpu_custom_call.1} parent=5 // pred_fallthru
        _
    $region6: #{tpu_custom_call.1} parent=1 // loop_footer
      %s19 = sadd.s32 1, %s15
    $region7: #{tpu_custom_call.1} parent=1 // loop_footer_branch
      %14 = sbr.rel target = $region3
    $region8: #{tpu_custom_call.1} parent=1 // loop_exit
      _

</llo_original>
